<compile_context>
chip_gen: v7x
topology: tpu7x:2x2x1
jax: 0.10.0
libtpu: 0.0.40
codegen_flags: <defaults>
</compile_context>

<pallas_src>
import math

import jax
import jax.numpy as jnp
from jax import lax
from jax.experimental import pallas as pl
from jax.experimental.pallas import tpu as pltpu

NEG = -1e30          # finite "minus infinity"; avoids 0 * -inf = NaN in masked matmuls
LANE = 128
SUBLANE = 8


def _round_up(v, m):
    return (v + m - 1) // m * m


def _make_kernel(*, n, n_pad, c, c_pad, tile, n_row_tiles, n_col_tiles,
                 entropy_weight, nn_dtype):
    """Builds the fused AGC-loss kernel; all sizes are static Python ints."""

    def kernel(xr_ref, xc_ref, pred_ref, pred_row_ref, out_ref,
               m_run, i_run, s_acc, o_ss, p_ss, o_sum):
        i = pl.program_id(0)   # row-tile index (samples whose neighbor we search)
        j = pl.program_id(1)   # column-tile index (neighbor candidates; reduction axis)

        # ---- init cross-row-tile accumulators once, at the very first grid step ----
        @pl.when(jnp.logical_and(i == 0, j == 0))
        def _():
            s_acc[...] = jnp.zeros_like(s_acc)
            o_ss[...] = jnp.zeros_like(o_ss)
            p_ss[...] = jnp.zeros_like(p_ss)
            o_sum[...] = jnp.zeros_like(o_sum)

        # ---- init per-row-tile online-argmax state at the start of each column sweep ----
        @pl.when(j == 0)
        def _():
            m_run[...] = jnp.full_like(m_run, -jnp.inf)
            i_run[...] = jnp.zeros_like(i_run)

        # ---- cosine-similarity tile [tile, tile] (bf16 MXU inputs, f32 accumulate) ----
        # NOTE: get_neighbor() is undefined in the reference source; we use cosine 1-NN
        # (self excluded, first-max tie-break).
        # NOTE: rsqrt(ss + eps) differs from F.normalize's clamp(norm, 1e-12) only for
        # near-zero rows.
        xr = xr_ref[...].astype(jnp.float32)
        xc = xc_ref[...].astype(jnp.float32)
        xr = xr * lax.rsqrt(jnp.sum(xr * xr, axis=1, keepdims=True) + 1e-12)   # EUP
        xc = xc * lax.rsqrt(jnp.sum(xc * xc, axis=1, keepdims=True) + 1e-12)
        sim = lax.dot_general(xr.astype(nn_dtype), xc.astype(nn_dtype),
                              (((1,), (1,)), ((), ())),
                              preferred_element_type=jnp.float32)              # [tile, tile]

        col_loc = lax.broadcasted_iota(jnp.int32, (tile, tile), 1)  # reused by the argmax

        # Self-similarity exclusion, branch-free: global diagonal iff
        #   col_global == row_global  <=>  col_loc == row_loc + (i - j) * tile.
        # For off-diagonal tiles the [tile,1] "self column" falls outside [0, tile), so
        # the mask is all-false (one compare + one select per tile; no [N,N] iotas).
        self_col = lax.broadcasted_iota(jnp.int32, (tile, 1), 0) + (i - j) * tile
        mask = col_loc == self_col
        if n_pad != n:
            # padded candidate rows must never be selected as neighbors
            mask = jnp.logical_or(mask, col_loc + j * tile >= n)
        sim = jnp.where(mask, NEG, sim)

        # ---- online 1-NN argmax (first-max tie-break, matches torch/jnp argmax) ----
        tile_max = jnp.max(sim, axis=1, keepdims=True)                         # [tile, 1]
        tile_arg = jnp.min(jnp.where(sim == tile_max, col_loc, tile),
                           axis=1, keepdims=True)                              # first hit
        better = tile_max > m_run[...]       # strict '>' keeps the earliest tile on ties
        m_run[...] = jnp.where(better, tile_max, m_run[...])
        i_run[...] = jnp.where(better, tile_arg + j * tile, i_run[...])

        # ---- after the last column tile: accumulate this row tile's statistics ----
        @pl.when(j == n_col_tiles - 1)
        def _():
            # neighbor gather: per-row-tile [tile, n_pad] one-hot @ resident pred.
            # Kept in f32 so the gathered logits (and hence the loss) are exact.
            onehot = (lax.broadcasted_iota(jnp.int32, (tile, n_pad), 1)
                      == i_run[...]).astype(jnp.float32)
            plog = jnp.dot(onehot, pred_ref[...],
                           preferred_element_type=jnp.float32)                 # [tile, c_pad]
            olog = pred_row_ref[...].astype(jnp.float32)                       # [tile, c_pad]

            # row softmax; padded class columns hold NEG -> exp underflows to exactly 0
            def softmax_rows(z):
                z = z - jnp.max(z, axis=1, keepdims=True)
                e = jnp.exp(z)
                # Exact divide on purpose: O(N*C) once per row tile, off the N^2 hot path.
                return e / jnp.sum(e, axis=1, keepdims=True)

            o_sm = softmax_rows(olog)
            p_sm = softmax_rows(plog)

            if n_pad != n:
                row_valid = (lax.broadcasted_iota(jnp.int32, (tile, 1), 0)
                             + i * tile < n).astype(jnp.float32)
                o_sm = o_sm * row_valid
                p_sm = p_sm * row_valid

            s_acc[...] += lax.dot_general(o_sm, p_sm, (((0,), (0,)), ((), ())),
                                          preferred_element_type=jnp.float32)  # [c_pad,c_pad]
            o_ss[...] += jnp.sum(o_sm * o_sm, axis=0, keepdims=True)
            p_ss[...] += jnp.sum(p_sm * p_sm, axis=0, keepdims=True)
            o_sum[...] += jnp.sum(o_sm, axis=0, keepdims=True)

        # ---- very last grid step: finalize the loss ----
        @pl.when(jnp.logical_and(i == n_row_tiles - 1, j == n_col_tiles - 1))
        def _():
            lane_id = lax.broadcasted_iota(jnp.int32, (1, c_pad), 1)
            sub_id = lax.broadcasted_iota(jnp.int32, (c_pad, 1), 0)
            eye = sub_id == lane_id                 # single broadcast compare, reused twice

            inv_on = lax.rsqrt(jnp.maximum(o_ss[...], 1e-24))   # 1/||ologits column||
            inv_pn = lax.rsqrt(jnp.maximum(p_ss[...], 1e-24))   # 1/||plogits column||
            # row-scale needs a sublane-oriented vector: eye-mask + row-reduce "transpose"
            inv_on_col = jnp.sum(jnp.where(eye, inv_on, 0.0), axis=1, keepdims=True)

            similarity = s_acc[...] * inv_on_col * inv_pn        # [c_pad, c_pad]
            if c_pad != c:
                similarity = jnp.where(lane_id < c, similarity, NEG)  # drop padded classes

            m = jnp.max(similarity, axis=1, keepdims=True)
            lse = jnp.log(jnp.sum(jnp.exp(similarity - m), axis=1, keepdims=True)) + m
            diag = jnp.sum(jnp.where(eye, similarity, 0.0), axis=1, keepdims=True)
            ce_terms = lse - diag
            if c_pad != c:
                ce_terms = jnp.where(sub_id < c, ce_terms, 0.0)
            loss_ce = jnp.sum(ce_terms) / c

            o = o_sum[...]
            o = o / jnp.sum(o)
            # guard 0*log(0) -> NaN (padded / empty classes)
            ent = jnp.sum(jnp.where(o > 0.0, o * jnp.log(jnp.maximum(o, 1e-38)), 0.0))
            loss_ne = math.log(c) + ent

            out_ref[0, 0] = loss_ce + entropy_weight * loss_ne

    return kernel


def agc_loss(attention_xs, pred, *, entropy_weight=2.0, tile_n=None,
             nn_dtype=jnp.bfloat16, vmem_limit_bytes=32 * 1024 * 1024):
    """Fused AGCLoss forward. tile_n: row/column tile over N (default min(256, N))."""
    x = jnp.asarray(attention_xs, jnp.float32)
    p = jnp.asarray(pred, jnp.float32)
    n, d = x.shape
    n2, c = p.shape
    assert n == n2, "attention_xs and pred must agree on the sample dimension"

    if tile_n is None:
        tile_n = min(256, _round_up(n, SUBLANE))     # v6e likes >=256; v5e is fine at 128+
    tile_n = max(SUBLANE, _round_up(tile_n, SUBLANE))

    n_pad = _round_up(n, tile_n)
    c_pad = _round_up(c, LANE)                       # lane-dense class dimension

    if n_pad != n:
        x = jnp.pad(x, ((0, n_pad - n), (0, 0)))
        p = jnp.pad(p, ((0, n_pad - n), (0, 0)))
    if c_pad != c:
        # padded classes get a huge negative logit -> softmax mass exactly 0
        p = jnp.pad(p, ((0, 0), (0, c_pad - c)), constant_values=NEG)

    n_row_tiles = n_pad // tile_n
    n_col_tiles = n_pad // tile_n

    kernel = _make_kernel(n=n, n_pad=n_pad, c=c, c_pad=c_pad, tile=tile_n,
                          n_row_tiles=n_row_tiles, n_col_tiles=n_col_tiles,
                          entropy_weight=float(entropy_weight), nn_dtype=nn_dtype)

    grid_spec = pltpu.PrefetchScalarGridSpec(
        num_scalar_prefetch=0,
        grid=(n_row_tiles, n_col_tiles),
        in_specs=[
            pl.BlockSpec((tile_n, d), lambda i, j: (i, 0)),      # x, row tile
            pl.BlockSpec((tile_n, d), lambda i, j: (j, 0)),      # x, column tile
            pl.BlockSpec((n_pad, c_pad), lambda i, j: (0, 0)),   # pred, fully resident
            pl.BlockSpec((tile_n, c_pad), lambda i, j: (i, 0)),  # pred, row tile
        ],
        out_specs=pl.BlockSpec((1, 1), lambda i, j: (0, 0),
                               memory_space=pltpu.MemorySpace.SMEM),
        scratch_shapes=[
            pltpu.VMEM((tile_n, 1), jnp.float32),     # running neighbor max
            pltpu.VMEM((tile_n, 1), jnp.int32),       # running neighbor argmax (global idx)
            pltpu.VMEM((c_pad, c_pad), jnp.float32),  # raw o_sm^T @ p_sm accumulator
            pltpu.VMEM((1, c_pad), jnp.float32),      # sum o_sm^2 per class column
            pltpu.VMEM((1, c_pad), jnp.float32),      # sum p_sm^2 per class column
            pltpu.VMEM((1, c_pad), jnp.float32),      # sum o_sm   per class column
        ],
    )

    out = pl.pallas_call(
        kernel,
        out_shape=jax.ShapeDtypeStruct((1, 1), jnp.float32),
        grid_spec=grid_spec,
        compiler_params=pltpu.CompilerParams(
            # Both grid axes reduce into the same scalar / CxC accumulators, so they must
            # stay "arbitrary" for correctness.
            # TODO(synk): on v7x, shard the row axis across the two TensorCores by emitting
            # per-core partial accumulators plus a final cross-core reduction.
            dimension_semantics=("arbitrary", "arbitrary"),
            vmem_limit_bytes=vmem_limit_bytes,   # raises v5e's 16 MiB scoped default
        ),
    )(x, x, p, p)
    return out[0, 0]


def _agc_loss_ref(x, pred, entropy_weight=2.0, nn_dtype=jnp.bfloat16):
    """Pure-JAX reference mirroring the PyTorch forward.

    The neighbor search uses the same bf16-rounded normalized features as the kernel so
    the (discrete) argmax is compared apples-to-apples; everything else is f32.
    """
    x = x.astype(jnp.float32)
    pred = pred.astype(jnp.float32)
    n, c = pred.shape
    x_n = x * jax.lax.rsqrt(jnp.sum(x * x, axis=1, keepdims=True) + 1e-12)
    xb = x_n.astype(nn_dtype)
    sim = jnp.dot(xb, xb, preferred_element_type=jnp.float32, precision=None).T if False \
        else jnp.dot(xb, xb.T, preferred_element_type=jnp.float32)
    sim = jnp.where(jnp.eye(n, dtype=bool), -jnp.inf, sim)
    nbr = jnp.argmax(sim, axis=1)
    plog = pred[nbr]
    o_sm = jax.nn.softmax(pred, axis=1)
    p_sm = jax.nn.softmax(plog, axis=1)
    o_cn = o_sm / jnp.maximum(jnp.linalg.norm(o_sm, axis=0, keepdims=True), 1e-12)
    p_cn = p_sm / jnp.maximum(jnp.linalg.norm(p_sm, axis=0, keepdims=True), 1e-12)
    s = o_cn.T @ p_cn
    loss_ce = jnp.mean(jax.nn.logsumexp(s, axis=1) - jnp.diag(s))
    o = o_sm.sum(0)
    o = o / o.sum()
    loss_ne = math.log(c) + jnp.sum(o * jnp.log(o))
    return loss_ce + entropy_weight * loss_ne


if __name__ == "__main__":
    key = jax.random.PRNGKey(0)
    k1, k2 = jax.random.split(key)
    N, D, C = 16, 32, 8
    attention_xs = jax.random.normal(k1, (N, D), dtype=jnp.float32)
    pred = jax.random.normal(k2, (N, C), dtype=jnp.float32)

    # tile_n=8 -> a 2x2 grid, so init / online-argmax / accumulate / finalize paths and the
    # diagonal-tile masking are all exercised even at this toy size.
    loss = agc_loss(attention_xs, pred, tile_n=8)
    loss = jax.block_until_ready(loss)

    ref = _agc_loss_ref(attention_xs, pred)
    assert jnp.isfinite(loss), "loss is not finite"
    assert jnp.allclose(loss, ref, atol=1e-4, rtol=1e-4), (loss, ref)
    print("KERNEL_OK")
</pallas_src>

<mosaic_0001>
module attributes {stable_mosaic.version = 11 : i64} {
  func.func @kernel(%arg0: i32, %arg1: i32, %arg2: memref<8x32xf32, #tpu.memory_space<vmem>>, %arg3: memref<8x32xf32, #tpu.memory_space<vmem>>, %arg4: memref<16x128xf32, #tpu.memory_space<vmem>>, %arg5: memref<8x128xf32, #tpu.memory_space<vmem>>, %arg6: memref<1x1xf32, #tpu.memory_space<smem>>, %arg7: memref<8x1xf32, #tpu.memory_space<vmem>>, %arg8: memref<8x1xi32, #tpu.memory_space<vmem>>, %arg9: memref<128x128xf32, #tpu.memory_space<vmem>>, %arg10: memref<1x128xf32, #tpu.memory_space<vmem>>, %arg11: memref<1x128xf32, #tpu.memory_space<vmem>>, %arg12: memref<1x128xf32, #tpu.memory_space<vmem>>) attributes {dimension_semantics = [#tpu.dimension_semantics<arbitrary>, #tpu.dimension_semantics<arbitrary>], iteration_bounds = array<i64: 2, 2>, scalar_prefetch = 0 : i64, scratch_operands = 6 : i64, tpu.core_type = #tpu.core_type<tc>, window_params = [{transform_indices = @transform_0, window_bounds = array<i64: 8, 32>}, {transform_indices = @transform_1, window_bounds = array<i64: 8, 32>}, {pipeline_mode = #tpu.pipeline_mode<synchronous>, transform_indices = @transform_2, window_bounds = array<i64: 16, 128>}, {transform_indices = @transform_3, window_bounds = array<i64: 8, 128>}, {transform_indices = @transform_4, window_bounds = array<i64: 1, 1>}]} {
    %c0_i32 = arith.constant 0 : i32
    %0 = arith.cmpi eq, %arg0, %c0_i32 : i32
    %c0_i32_0 = arith.constant 0 : i32
    %1 = arith.cmpi eq, %arg1, %c0_i32_0 : i32
    %2 = arith.andi %0, %1 : i1
    %3 = arith.extui %2 : i1 to i32
    %c0_i32_1 = arith.constant 0 : i32
    %4 = arith.cmpi ne, %3, %c0_i32_1 : i32
    scf.if %4 {
      %cst_30 = arith.constant 0.000000e+00 : f32
      %66 = vector.broadcast %cst_30 : f32 to vector<128x128xf32>
      %c0_31 = arith.constant 0 : index
      %c0_32 = arith.constant 0 : index
      %67 = vector.load %arg9[%c0_31, %c0_32] : memref<128x128xf32, #tpu.memory_space<vmem>>, vector<128x128xf32>
      tpu.vector_store %arg9[%c0_31, %c0_32], %66 {strides = array<i32>} : memref<128x128xf32, #tpu.memory_space<vmem>>, vector<128x128xf32>,
      %cst_33 = arith.constant 0.000000e+00 : f32
      %68 = vector.broadcast %cst_33 : f32 to vector<1x128xf32>
      %c0_34 = arith.constant 0 : index
      %c0_35 = arith.constant 0 : index
      %69 = vector.load %arg10[%c0_34, %c0_35] : memref<1x128xf32, #tpu.memory_space<vmem>>, vector<1x128xf32>
      tpu.vector_store %arg10[%c0_34, %c0_35], %68 {strides = array<i32>} : memref<1x128xf32, #tpu.memory_space<vmem>>, vector<1x128xf32>,
      %cst_36 = arith.constant 0.000000e+00 : f32
      %70 = vector.broadcast %cst_36 : f32 to vector<1x128xf32>
      %c0_37 = arith.constant 0 : index
      %c0_38 = arith.constant 0 : index
      %71 = vector.load %arg11[%c0_37, %c0_38] : memref<1x128xf32, #tpu.memory_space<vmem>>, vector<1x128xf32>
      tpu.vector_store %arg11[%c0_37, %c0_38], %70 {strides = array<i32>} : memref<1x128xf32, #tpu.memory_space<vmem>>, vector<1x128xf32>,
      %cst_39 = arith.constant 0.000000e+00 : f32
      %72 = vector.broadcast %cst_39 : f32 to vector<1x128xf32>
      %c0_40 = arith.constant 0 : index
      %c0_41 = arith.constant 0 : index
      %73 = vector.load %arg12[%c0_40, %c0_41] : memref<1x128xf32, #tpu.memory_space<vmem>>, vector<1x128xf32>
      tpu.vector_store %arg12[%c0_40, %c0_41], %72 {strides = array<i32>} : memref<1x128xf32, #tpu.memory_space<vmem>>, vector<1x128xf32>,
    } else {
    }
    %c0_i32_2 = arith.constant 0 : i32
    %5 = arith.cmpi eq, %arg1, %c0_i32_2 : i32
    %6 = arith.extui %5 : i1 to i32
    %c0_i32_3 = arith.constant 0 : i32
    %7 = arith.cmpi ne, %6, %c0_i32_3 : i32
    scf.if %7 {
      %cst_30 = arith.constant 0xFF800000 : f32
      %66 = vector.broadcast %cst_30 : f32 to vector<8x1xf32>
      %c0_31 = arith.constant 0 : index
      %c0_32 = arith.constant 0 : index
      %67 = vector.load %arg7[%c0_31, %c0_32] : memref<8x1xf32, #tpu.memory_space<vmem>>, vector<8x1xf32>
      tpu.vector_store %arg7[%c0_31, %c0_32], %66 {strides = array<i32>} : memref<8x1xf32, #tpu.memory_space<vmem>>, vector<8x1xf32>,
      %c0_i32_33 = arith.constant 0 : i32
      %68 = vector.broadcast %c0_i32_33 : i32 to vector<8x1xi32>
      %c0_34 = arith.constant 0 : index
      %c0_35 = arith.constant 0 : index
      %69 = vector.load %arg8[%c0_34, %c0_35] : memref<8x1xi32, #tpu.memory_space<vmem>>, vector<8x1xi32>
      tpu.vector_store %arg8[%c0_34, %c0_35], %68 {strides = array<i32>} : memref<8x1xi32, #tpu.memory_space<vmem>>, vector<8x1xi32>,
    } else {
    }
    %c0 = arith.constant 0 : index
    %c0_4 = arith.constant 0 : index
    %8 = vector.load %arg2[%c0, %c0_4] : memref<8x32xf32, #tpu.memory_space<vmem>>, vector<8x32xf32>
    %c0_5 = arith.constant 0 : index
    %c0_6 = arith.constant 0 : index
    %9 = vector.load %arg3[%c0_5, %c0_6] : memref<8x32xf32, #tpu.memory_space<vmem>>, vector<8x32xf32>
    %10 = arith.mulf %8, %8 : vector<8x32xf32>
    %cst = arith.constant dense<0.000000e+00> : vector<8xf32>
    %11 = vector.multi_reduction <add>, %10, %cst [1] : vector<8x32xf32> to vector<8xf32>
    %12 = vector.shape_cast %11 : vector<8xf32> to vector<8x1xf32>
    %cst_7 = arith.constant 9.99999996E-13 : f32
    %13 = vector.broadcast %cst_7 : f32 to vector<8x1xf32>
    %14 = arith.addf %12, %13 : vector<8x1xf32>
    %15 = math.rsqrt %14 : vector<8x1xf32>
    %16 = vector.broadcast %15 : vector<8x1xf32> to vector<8x32xf32>
    %17 = arith.mulf %8, %16 : vector<8x32xf32>
    %18 = arith.mulf %9, %9 : vector<8x32xf32>
    %cst_8 = arith.constant dense<0.000000e+00> : vector<8xf32>
    %19 = vector.multi_reduction <add>, %18, %cst_8 [1] : vector<8x32xf32> to vector<8xf32>
    %20 = vector.shape_cast %19 : vector<8xf32> to vector<8x1xf32>
    %cst_9 = arith.constant 9.99999996E-13 : f32
    %21 = vector.broadcast %cst_9 : f32 to vector<8x1xf32>
    %22 = arith.addf %20, %21 : vector<8x1xf32>
    %23 = math.rsqrt %22 : vector<8x1xf32>
    %24 = vector.broadcast %23 : vector<8x1xf32> to vector<8x32xf32>
    %25 = arith.mulf %9, %24 : vector<8x32xf32>
    %26 = arith.truncf %17 : vector<8x32xf32> to vector<8x32xbf16>
    %27 = arith.truncf %25 : vector<8x32xf32> to vector<8x32xbf16>
    %cst_10 = arith.constant dense<0.000000e+00> : vector<8x8xf32>
    %28 = tpu.matmul %26, %27, %cst_10 {dimension_numbers = #tpu.dot_dimension_numbers<[1], [1], [0], [0], [0, 0, 1, 0], [], []>} : vector<8x32xbf16>, vector<8x32xbf16>, vector<8x8xf32> -> vector<8x8xf32>
    %29 = tpu.iota {dimensions = array<i32: 1>} : vector<8x8xi32>
    %30 = tpu.iota {dimensions = array<i32: 0>} : vector<8x1xi32>
    %31 = arith.subi %arg0, %arg1 : i32
    %c8_i32 = arith.constant 8 : i32
    %32 = arith.muli %31, %c8_i32 : i32
    %33 = vector.broadcast %32 : i32 to vector<8x1xi32>
    %34 = arith.addi %30, %33 : vector<8x1xi32>
    %35 = vector.broadcast %34 : vector<8x1xi32> to vector<8x8xi32>
    %36 = arith.cmpi eq, %29, %35 : vector<8x8xi32>
    %cst_11 = arith.constant -1.000000e+30 : f32
    %37 = vector.broadcast %cst_11 : f32 to vector<8x8xf32>
    %38 = arith.select %36, %37, %28 : vector<8x8xi1>, vector<8x8xf32>
    %cst_12 = arith.constant dense<0xFF800000> : vector<8xf32>
    %39 = vector.multi_reduction <maximumf>, %38, %cst_12 [1] : vector<8x8xf32> to vector<8xf32>
    %40 = vector.shape_cast %39 : vector<8xf32> to vector<8x1xf32>
    %41 = vector.broadcast %40 : vector<8x1xf32> to vector<8x8xf32>
    %42 = arith.cmpf oeq, %38, %41 : vector<8x8xf32>
    %c8_i32_13 = arith.constant 8 : i32
    %43 = vector.broadcast %c8_i32_13 : i32 to vector<8x8xi32>
    %44 = arith.select %42, %29, %43 : vector<8x8xi1>, vector<8x8xi32>
    %cst_14 = arith.constant dense<2147483647> : vector<8xi32>
    %45 = vector.multi_reduction <minsi>, %44, %cst_14 [1] : vector<8x8xi32> to vector<8xi32>
    %46 = vector.shape_cast %45 : vector<8xi32> to vector<8x1xi32>
    %c0_15 = arith.constant 0 : index
    %c0_16 = arith.constant 0 : index
    %47 = vector.load %arg7[%c0_15, %c0_16] : memref<8x1xf32, #tpu.memory_space<vmem>>, vector<8x1xf32>
    %48 = arith.cmpf ogt, %40, %47 : vector<8x1xf32>
    %c0_17 = arith.constant 0 : index
    %c0_18 = arith.constant 0 : index
    %49 = vector.load %arg7[%c0_17, %c0_18] : memref<8x1xf32, #tpu.memory_space<vmem>>, vector<8x1xf32>
    %50 = arith.select %48, %40, %49 : vector<8x1xi1>, vector<8x1xf32>
    %c0_19 = arith.constant 0 : index
    %c0_20 = arith.constant 0 : index
    %51 = vector.load %arg7[%c0_19, %c0_20] : memref<8x1xf32, #tpu.memory_space<vmem>>, vector<8x1xf32>
    tpu.vector_store %arg7[%c0_19, %c0_20], %50 {strides = array<i32>} : memref<8x1xf32, #tpu.memory_space<vmem>>, vector<8x1xf32>,
    %c8_i32_21 = arith.constant 8 : i32
    %52 = arith.muli %arg1, %c8_i32_21 : i32
    %53 = vector.broadcast %52 : i32 to vector<8x1xi32>
    %54 = arith.addi %46, %53 : vector<8x1xi32>
    %c0_22 = arith.constant 0 : index
    %c0_23 = arith.constant 0 : index
    %55 = vector.load %arg8[%c0_22, %c0_23] : memref<8x1xi32, #tpu.memory_space<vmem>>, vector<8x1xi32>
    %56 = arith.select %48, %54, %55 : vector<8x1xi1>, vector<8x1xi32>
    %c0_24 = arith.constant 0 : index
    %c0_25 = arith.constant 0 : index
    %57 = vector.load %arg8[%c0_24, %c0_25] : memref<8x1xi32, #tpu.memory_space<vmem>>, vector<8x1xi32>
    tpu.vector_store %arg8[%c0_24, %c0_25], %56 {strides = array<i32>} : memref<8x1xi32, #tpu.memory_space<vmem>>, vector<8x1xi32>,
    %c1_i32 = arith.constant 1 : i32
    %58 = arith.cmpi eq, %arg1, %c1_i32 : i32
    %59 = arith.extui %58 : i1 to i32
    %c0_i32_26 = arith.constant 0 : i32
    %60 = arith.cmpi ne, %59, %c0_i32_26 : i32
    scf.if %60 {
      %66 = tpu.iota {dimensions = array<i32: 1>} : vector<8x16xi32>
      %c0_30 = arith.constant 0 : index
      %c0_31 = arith.constant 0 : index
      %67 = vector.load %arg8[%c0_30, %c0_31] : memref<8x1xi32, #tpu.memory_space<vmem>>, vector<8x1xi32>
      %68 = vector.broadcast %67 : vector<8x1xi32> to vector<8x16xi32>
      %69 = arith.cmpi eq, %66, %68 : vector<8x16xi32>
      %70 = arith.extui %69 : vector<8x16xi1> to vector<8x16xi32>
      %71 = arith.sitofp %70 : vector<8x16xi32> to vector<8x16xf32>
      %c0_32 = arith.constant 0 : index
      %c0_33 = arith.constant 0 : index
      %72 = vector.load %arg4[%c0_32, %c0_33] : memref<16x128xf32, #tpu.memory_space<vmem>>, vector<16x128xf32>
      %cst_34 = arith.constant dense<0.000000e+00> : vector<8x128xf32>
      %73 = tpu.matmul %71, %72, %cst_34 {dimension_numbers = #tpu.dot_dimension_numbers<[1], [0], [0], [1], [0, 0, 1, 1], [], []>} : vector<8x16xf32>, vector<16x128xf32>, vector<8x128xf32> -> vector<8x128xf32>
      %c0_35 = arith.constant 0 : index
      %c0_36 = arith.constant 0 : index
      %74 = vector.load %arg5[%c0_35, %c0_36] : memref<8x128xf32, #tpu.memory_space<vmem>>, vector<8x128xf32>
      %cst_37 = arith.constant dense<0xFF800000> : vector<8xf32>
      %75 = vector.multi_reduction <maximumf>, %74, %cst_37 [1] : vector<8x128xf32> to vector<8xf32>
      %76 = vector.shape_cast %75 : vector<8xf32> to vector<8x1xf32>
      %77 = vector.broadcast %76 : vector<8x1xf32> to vector<8x128xf32>
      %78 = arith.subf %74, %77 : vector<8x128xf32>
      %79 = math.exp %78 : vector<8x128xf32>
      %cst_38 = arith.constant dense<0.000000e+00> : vector<8xf32>
      %80 = vector.multi_reduction <add>, %79, %cst_38 [1] : vector<8x128xf32> to vector<8xf32>
      %81 = vector.shape_cast %80 : vector<8xf32> to vector<8x1xf32>
      %82 = vector.broadcast %81 : vector<8x1xf32> to vector<8x128xf32>
      %83 = arith.divf %79, %82 : vector<8x128xf32>
      %cst_39 = arith.constant dense<0xFF800000> : vector<8xf32>
      %84 = vector.multi_reduction <maximumf>, %73, %cst_39 [1] : vector<8x128xf32> to vector<8xf32>
      %85 = vector.shape_cast %84 : vector<8xf32> to vector<8x1xf32>
      %86 = vector.broadcast %85 : vector<8x1xf32> to vector<8x128xf32>
      %87 = arith.subf %73, %86 : vector<8x128xf32>
      %88 = math.exp %87 : vector<8x128xf32>
      %cst_40 = arith.constant dense<0.000000e+00> : vector<8xf32>
      %89 = vector.multi_reduction <add>, %88, %cst_40 [1] : vector<8x128xf32> to vector<8xf32>
      %90 = vector.shape_cast %89 : vector<8xf32> to vector<8x1xf32>
      %91 = vector.broadcast %90 : vector<8x1xf32> to vector<8x128xf32>
      %92 = arith.divf %88, %91 : vector<8x128xf32>
      %c0_41 = arith.constant 0 : index
      %c0_42 = arith.constant 0 : index
      %93 = vector.load %arg9[%c0_41, %c0_42] : memref<128x128xf32, #tpu.memory_space<vmem>>, vector<128x128xf32>
      %cst_43 = arith.constant dense<0.000000e+00> : vector<128x128xf32>
      %94 = tpu.matmul %83, %92, %cst_43 {dimension_numbers = #tpu.dot_dimension_numbers<[0], [0], [1], [1], [0, 1, 1, 1], [], []>} : vector<8x128xf32>, vector<8x128xf32>, vector<128x128xf32> -> vector<128x128xf32>
      %95 = arith.addf %93, %94 : vector<128x128xf32>
      %c0_44 = arith.constant 0 : index
      %c0_45 = arith.constant 0 : index
      %96 = vector.load %arg9[%c0_44, %c0_45] : memref<128x128xf32, #tpu.memory_space<vmem>>, vector<128x128xf32>
      tpu.vector_store %arg9[%c0_44, %c0_45], %95 {strides = array<i32>} : memref<128x128xf32, #tpu.memory_space<vmem>>, vector<128x128xf32>,
      %c0_46 = arith.constant 0 : index
      %c0_47 = arith.constant 0 : index
      %97 = vector.load %arg10[%c0_46, %c0_47] : memref<1x128xf32, #tpu.memory_space<vmem>>, vector<1x128xf32>
      %98 = arith.mulf %83, %83 : vector<8x128xf32>
      %cst_48 = arith.constant dense<0.000000e+00> : vector<128xf32>
      %99 = vector.multi_reduction <add>, %98, %cst_48 [0] : vector<8x128xf32> to vector<128xf32>
      %100 = vector.shape_cast %99 : vector<128xf32> to vector<1x128xf32>
      %101 = arith.addf %97, %100 : vector<1x128xf32>
      %c0_49 = arith.constant 0 : index
      %c0_50 = arith.constant 0 : index
      %102 = vector.load %arg10[%c0_49, %c0_50] : memref<1x128xf32, #tpu.memory_space<vmem>>, vector<1x128xf32>
      tpu.vector_store %arg10[%c0_49, %c0_50], %101 {strides = array<i32>} : memref<1x128xf32, #tpu.memory_space<vmem>>, vector<1x128xf32>,
      %c0_51 = arith.constant 0 : index
      %c0_52 = arith.constant 0 : index
      %103 = vector.load %arg11[%c0_51, %c0_52] : memref<1x128xf32, #tpu.memory_space<vmem>>, vector<1x128xf32>
      %104 = arith.mulf %92, %92 : vector<8x128xf32>
      %cst_53 = arith.constant dense<0.000000e+00> : vector<128xf32>
      %105 = vector.multi_reduction <add>, %104, %cst_53 [0] : vector<8x128xf32> to vector<128xf32>
      %106 = vector.shape_cast %105 : vector<128xf32> to vector<1x128xf32>
      %107 = arith.addf %103, %106 : vector<1x128xf32>
      %c0_54 = arith.constant 0 : index
      %c0_55 = arith.constant 0 : index
      %108 = vector.load %arg11[%c0_54, %c0_55] : memref<1x128xf32, #tpu.memory_space<vmem>>, vector<1x128xf32>
      tpu.vector_store %arg11[%c0_54, %c0_55], %107 {strides = array<i32>} : memref<1x128xf32, #tpu.memory_space<vmem>>, vector<1x128xf32>,
      %c0_56 = arith.constant 0 : index
      %c0_57 = arith.constant 0 : index
      %109 = vector.load %arg12[%c0_56, %c0_57] : memref<1x128xf32, #tpu.memory_space<vmem>>, vector<1x128xf32>
      %cst_58 = arith.constant dense<0.000000e+00> : vector<128xf32>
      %110 = vector.multi_reduction <add>, %83, %cst_58 [0] : vector<8x128xf32> to vector<128xf32>
      %111 = vector.shape_cast %110 : vector<128xf32> to vector<1x128xf32>
      %112 = arith.addf %109, %111 : vector<1x128xf32>
      %c0_59 = arith.constant 0 : index
      %c0_60 = arith.constant 0 : index
      %113 = vector.load %arg12[%c0_59, %c0_60] : memref<1x128xf32, #tpu.memory_space<vmem>>, vector<1x128xf32>
      tpu.vector_store %arg12[%c0_59, %c0_60], %112 {strides = array<i32>} : memref<1x128xf32, #tpu.memory_space<vmem>>, vector<1x128xf32>,
    } else {
    }
    %c1_i32_27 = arith.constant 1 : i32
    %61 = arith.cmpi eq, %arg0, %c1_i32_27 : i32
    %c1_i32_28 = arith.constant 1 : i32
    %62 = arith.cmpi eq, %arg1, %c1_i32_28 : i32
    %63 = arith.andi %61, %62 : i1
    %64 = arith.extui %63 : i1 to i32
    %c0_i32_29 = arith.constant 0 : i32
    %65 = arith.cmpi ne, %64, %c0_i32_29 : i32
    scf.if %65 {
      %66 = tpu.iota {dimensions = array<i32: 1>} : vector<1x128xi32>
      %67 = tpu.iota {dimensions = array<i32: 0>} : vector<128x1xi32>
      %68 = vector.broadcast %67 : vector<128x1xi32> to vector<128x128xi32>
      %69 = vector.broadcast %66 : vector<1x128xi32> to vector<128x128xi32>
      %70 = arith.cmpi eq, %68, %69 : vector<128x128xi32>
      %c0_30 = arith.constant 0 : index
      %c0_31 = arith.constant 0 : index
      %71 = vector.load %arg10[%c0_30, %c0_31] : memref<1x128xf32, #tpu.memory_space<vmem>>, vector<1x128xf32>
      %cst_32 = arith.constant 1.000000e-24 : f32
      %72 = vector.broadcast %cst_32 : f32 to vector<1x128xf32>
      %73 = arith.maximumf %71, %72 : vector<1x128xf32>
      %74 = math.rsqrt %73 : vector<1x128xf32>
      %c0_33 = arith.constant 0 : index
      %c0_34 = arith.constant 0 : index
      %75 = vector.load %arg11[%c0_33, %c0_34] : memref<1x128xf32, #tpu.memory_space<vmem>>, vector<1x128xf32>
      %cst_35 = arith.constant 1.000000e-24 : f32
      %76 = vector.broadcast %cst_35 : f32 to vector<1x128xf32>
      %77 = arith.maximumf %75, %76 : vector<1x128xf32>
      %78 = math.rsqrt %77 : vector<1x128xf32>
      %cst_36 = arith.constant 0.000000e+00 : f32
      %79 = vector.shape_cast %74 : vector<1x128xf32> to vector<1x128xf32>
      %80 = vector.broadcast %79 : vector<1x128xf32> to vector<128x128xf32>
      %81 = vector.broadcast %cst_36 : f32 to vector<128x128xf32>
      %82 = arith.select %70, %80, %81 : vector<128x128xi1>, vector<128x128xf32>
      %cst_37 = arith.constant dense<0.000000e+00> : vector<128xf32>
      %83 = vector.multi_reduction <add>, %82, %cst_37 [1] : vector<128x128xf32> to vector<128xf32>
      %84 = vector.shape_cast %83 : vector<128xf32> to vector<128x1xf32>
      %c0_38 = arith.constant 0 : index
      %c0_39 = arith.constant 0 : index
      %85 = vector.load %arg9[%c0_38, %c0_39] : memref<128x128xf32, #tpu.memory_space<vmem>>, vector<128x128xf32>
      %86 = vector.broadcast %84 : vector<128x1xf32> to vector<128x128xf32>
      %87 = arith.mulf %85, %86 : vector<128x128xf32>
      %88 = vector.broadcast %78 : vector<1x128xf32> to vector<128x128xf32>
      %89 = arith.mulf %87, %88 : vector<128x128xf32>
      %c8_i32_40 = arith.constant 8 : i32
      %90 = vector.broadcast %c8_i32_40 : i32 to vector<1x128xi32>
      %91 = arith.cmpi slt, %66, %90 : vector<1x128xi32>
      %cst_41 = arith.constant -1.000000e+30 : f32
      %92 = vector.shape_cast %91 : vector<1x128xi1> to vector<1x128xi1>
      %93 = vector.broadcast %92 : vector<1x128xi1> to vector<128x128xi1>
      %94 = vector.broadcast %cst_41 : f32 to vector<128x128xf32>
      %95 = arith.select %93, %89, %94 : vector<128x128xi1>, vector<128x128xf32>
      %cst_42 = arith.constant dense<0xFF800000> : vector<128xf32>
      %96 = vector.multi_reduction <maximumf>, %95, %cst_42 [1] : vector<128x128xf32> to vector<128xf32>
      %97 = vector.shape_cast %96 : vector<128xf32> to vector<128x1xf32>
      %98 = vector.broadcast %97 : vector<128x1xf32> to vector<128x128xf32>
      %99 = arith.subf %95, %98 : vector<128x128xf32>
      %100 = math.exp %99 : vector<128x128xf32>
      %cst_43 = arith.constant dense<0.000000e+00> : vector<128xf32>
      %101 = vector.multi_reduction <add>, %100, %cst_43 [1] : vector<128x128xf32> to vector<128xf32>
      %102 = vector.shape_cast %101 : vector<128xf32> to vector<128x1xf32>
      %103 = math.log %102 : vector<128x1xf32>
      %104 = arith.addf %103, %97 : vector<128x1xf32>
      %cst_44 = arith.constant 0.000000e+00 : f32
      %105 = vector.broadcast %cst_44 : f32 to vector<128x128xf32>
      %106 = arith.select %70, %95, %105 : vector<128x128xi1>, vector<128x128xf32>
      %cst_45 = arith.constant dense<0.000000e+00> : vector<128xf32>
      %107 = vector.multi_reduction <add>, %106, %cst_45 [1] : vector<128x128xf32> to vector<128xf32>
      %108 = vector.shape_cast %107 : vector<128xf32> to vector<128x1xf32>
      %109 = arith.subf %104, %108 : vector<128x1xf32>
      %c8_i32_46 = arith.constant 8 : i32
      %110 = vector.broadcast %c8_i32_46 : i32 to vector<128x1xi32>
      %111 = arith.cmpi slt, %67, %110 : vector<128x1xi32>
      %cst_47 = arith.constant 0.000000e+00 : f32
      %112 = vector.broadcast %cst_47 : f32 to vector<128x1xf32>
      %113 = arith.select %111, %109, %112 : vector<128x1xi1>, vector<128x1xf32>
      %114 = vector.shape_cast %113 : vector<128x1xf32> to vector<1x128x1xf32>
      %cst_48 = arith.constant dense<0.000000e+00> : vector<1xf32>
      %115 = vector.multi_reduction <add>, %114, %cst_48 [1, 2] : vector<1x128x1xf32> to vector<1xf32>
      %116 = vector.shape_cast %115 : vector<1xf32> to vector<1x1x1xf32>
      %117 = vector.extract %116[0, 0, 0] : f32 from vector<1x1x1xf32>
      %cst_49 = arith.constant 8.000000e+00 : f32
      %118 = arith.divf %117, %cst_49 : f32
      %c0_50 = arith.constant 0 : index
      %c0_51 = arith.constant 0 : index
      %119 = vector.load %arg12[%c0_50, %c0_51] : memref<1x128xf32, #tpu.memory_space<vmem>>, vector<1x128xf32>
      %120 = vector.shape_cast %119 : vector<1x128xf32> to vector<1x1x128xf32>
      %cst_52 = arith.constant dense<0.000000e+00> : vector<1xf32>
      %121 = vector.multi_reduction <add>, %120, %cst_52 [1, 2] : vector<1x1x128xf32> to vector<1xf32>
      %122 = vector.shape_cast %121 : vector<1xf32> to vector<1x1x1xf32>
      %123 = vector.extract %122[0, 0, 0] : f32 from vector<1x1x1xf32>
      %124 = vector.broadcast %123 : f32 to vector<1x128xf32>
      %125 = arith.divf %119, %124 : vector<1x128xf32>
      %cst_53 = arith.constant 0.000000e+00 : f32
      %126 = vector.broadcast %cst_53 : f32 to vector<1x128xf32>
      %127 = arith.cmpf ogt, %125, %126 : vector<1x128xf32>
      %cst_54 = arith.constant 9.99999935E-39 : f32
      %128 = vector.broadcast %cst_54 : f32 to vector<1x128xf32>
      %129 = arith.maximumf %125, %128 : vector<1x128xf32>
      %130 = math.log %129 : vector<1x128xf32>
      %131 = arith.mulf %125, %130 : vector<1x128xf32>
      %cst_55 = arith.constant 0.000000e+00 : f32
      %132 = vector.broadcast %cst_55 : f32 to vector<1x128xf32>
      %133 = arith.select %127, %131, %132 : vector<1x128xi1>, vector<1x128xf32>
      %134 = vector.shape_cast %133 : vector<1x128xf32> to vector<1x1x128xf32>
      %cst_56 = arith.constant dense<0.000000e+00> : vector<1xf32>
      %135 = vector.multi_reduction <add>, %134, %cst_56 [1, 2] : vector<1x1x128xf32> to vector<1xf32>
      %136 = vector.shape_cast %135 : vector<1xf32> to vector<1x1x1xf32>
      %137 = vector.extract %136[0, 0, 0] : f32 from vector<1x1x1xf32>
      %cst_57 = arith.constant 2.07944155 : f32
      %138 = arith.addf %cst_57, %137 : f32
      %cst_58 = arith.constant 2.000000e+00 : f32
      %139 = arith.mulf %cst_58, %138 : f32
      %140 = arith.addf %118, %139 : f32
      %c0_59 = arith.constant 0 : index
      %c0_60 = arith.constant 0 : index
      %141 = memref.load %arg6[%c0_59, %c0_60] : memref<1x1xf32, #tpu.memory_space<smem>>
      memref.store %140, %arg6[%c0_59, %c0_60] : memref<1x1xf32, #tpu.memory_space<smem>>
    } else {
    }
    return
  }
  func.func @transform_0(%arg0: i32, %arg1: i32) -> (i32, i32) {
    %c0_i32 = arith.constant 0 : i32
    %c0_i32_0 = arith.constant 0 : i32
    return %arg0, %c0_i32 : i32, i32
  }
  func.func @transform_1(%arg0: i32, %arg1: i32) -> (i32, i32) {
    %c0_i32 = arith.constant 0 : i32
    %c0_i32_0 = arith.constant 0 : i32
    return %arg1, %c0_i32 : i32, i32
  }
  func.func @transform_2(%arg0: i32, %arg1: i32) -> (i32, i32) {
    %c0_i32 = arith.constant 0 : i32
    %c0_i32_0 = arith.constant 0 : i32
    %c0_i32_1 = arith.constant 0 : i32
    return %c0_i32, %c0_i32_0 : i32, i32
  }
  func.func @transform_3(%arg0: i32, %arg1: i32) -> (i32, i32) {
    %c0_i32 = arith.constant 0 : i32
    %c0_i32_0 = arith.constant 0 : i32
    return %arg0, %c0_i32 : i32, i32
  }
  func.func @transform_4(%arg0: i32, %arg1: i32) -> (i32, i32) {
    %c0_i32 = arith.constant 0 : i32
    %c0_i32_0 = arith.constant 0 : i32
    %c0_i32_1 = arith.constant 0 : i32
    return %c0_i32, %c0_i32_0 : i32, i32
  }
}

</mosaic_0001>

<llo_original>
// kernel: tpu_custom_call.1
$region0: #{tpu_custom_call.1}
  #allocation0 [shape = 'u32[]', space=smem, size = 0x4, offset = 0x4, fixed_abs, tag = 'smem constant byte address 0x4 - core index']
  #allocation1 [shape = 'u32[144,128]{1,0:T(1,128)}', space=vmem, size = 0x12000, scoped, tag = 'internal scratch']
  #allocation2 [shape = 'f32[8,1]{1,0:T(8,128)}', space=vmem, size = 0x1000, scoped, tag = 'scratch operand']
  #allocation3 [shape = 's32[8,1]{1,0:T(8,128)}', space=vmem, size = 0x1000, scoped, tag = 'scratch operand']
  #allocation4 [shape = 'f32[128,128]{1,0:T(8,128)}', space=vmem, size = 0x10000, scoped, tag = 'scratch operand']
  #allocation5 [shape = 'f32[1,128]{1,0:T(1,128)}', space=vmem, size = 0x200, scoped, tag = 'scratch operand']
  #allocation6 [shape = 'f32[1,128]{1,0:T(1,128)}', space=vmem, size = 0x200, scoped, tag = 'scratch operand']
  #allocation7 [shape = 'f32[1,128]{1,0:T(1,128)}', space=vmem, size = 0x200, scoped, tag = 'scratch operand']
  %s0 = inlined_call_operand.hbm [shape: f32[16,32], index: 0, kind: input, shape index: {}]
  %s1 = inlined_call_operand.hbm [shape: f32[16,32], index: 1, kind: input, shape index: {}]
  %s2 = inlined_call_operand.hbm [shape: f32[16,128], index: 2, kind: input, shape index: {}]
  %s3 = inlined_call_operand.hbm [shape: f32[16,128], index: 3, kind: input, shape index: {}]
  %s4 = inlined_call_operand.hbm [shape: f32[1,1], index: 4, kind: output, shape index: {}]
  %s5 = sld [smem:[#allocation0]]
  $region81: #{tpu_custom_call.1} parent=0
    _
  %s7 = ssub.s32 1, %s5
  %s8 = scalar_select 0, %s7, %s5
  $region1: #{tpu_custom_call.1} parent=0
    #allocation8 [shape = 'u8[8192]{0}', space=vmem, size = 0x2000, scoped, tag = 'input window, operand 0']
    #allocation9 [shape = 's32[2]{0}', space=sflag, size = 0x8, scoped, tag = 'scoped memory for tpu_custom_call.1']
    #allocation10 [shape = 's32[2]{0}', space=sflag, size = 0x8, scoped, tag = 'scoped memory for tpu_custom_call.1']
    #allocation11 [shape = 'u8[8192]{0}', space=vmem, size = 0x2000, scoped, tag = 'input window, operand 1']
    #allocation12 [shape = 's32[2]{0}', space=sflag, size = 0x8, scoped, tag = 'scoped memory for tpu_custom_call.1']
    #allocation13 [shape = 'u8[8192]{0}', space=vmem, size = 0x2000, scoped, tag = 'input window, operand 2, single buffered']
    #allocation14 [shape = 'u8[8192]{0}', space=vmem, size = 0x2000, scoped, tag = 'input window, operand 3']
    #allocation15 [shape = 's32[2]{0}', space=sflag, size = 0x8, scoped, tag = 'scoped memory for tpu_custom_call.1']
    #allocation16 [shape = 'u8[512]{0}', space=smem, size = 0x200, scoped, tag = 'output window, operand 0, single buffered']
    %9 = vsyncpa [#allocation9], 0
    %s10 = scalar_lea.sflag [#allocation9], 1
    %11 = vsyncpa %s10, 0
    %12 = vsyncpa [#allocation12], 0
    %s13 = scalar_lea.sflag [#allocation12], 1
    %14 = vsyncpa %s13, 0
    %15 = vsyncpa [#allocation15], 0
    %s16 = scalar_lea.sflag [#allocation15], 1
    %17 = vsyncpa %s16, 0
    %18 = vsyncpa [#allocation10], 0
    loop: start=0, step=1, limit=6
    $region2: #{tpu_custom_call.1} parent=1 // loop_pre_header
      _
    $region3: #{tpu_custom_call.1} parent=1 // loop_header
      %s20 = sphi 0, %s24
      %p21 = scmp.ge.s32.totalorder %s20, 6
      %s27 = sphi 0, %s39
      %s28 = sphi 0, %s35
      %s29 = sphi 0, %s27
      %s30 = sphi 0, %s28
      %s31 = sphi 0, %s29
      %s32 = sphi 0, %s30
      %s42 = sphi 0, %s44
      %s45 = sphi 0, %s42
      %s46 = sphi 0, %s45
      %s62 = sphi 0, %s46
      %s68 = sphi 0, %s70
      %s71 = sphi 0, %s68
      %s72 = sphi 0, %s71
      %s88 = sphi 0, %s72
      %s92 = sphi 0, %s92
      %s94 = sphi 0, %s92
      %s95 = sphi 0, %s94
      %s109 = sphi 0, %s95
      %s115 = sphi 0, %s117
      %s118 = sphi 0, %s115
      %s119 = sphi 0, %s118
      %s135 = sphi 0, %s119
      %s139 = sphi 0, %s139
      %s141 = sphi 0, %s139
      %s142 = sphi 0, %s141
      %s156 = sphi 0, %s142
    $region4: #{tpu_custom_call.1} parent=1 // loop_header_branch
      %23 = sbr.rel (%p21) target = $region8
    $region5: #{tpu_custom_call.1} parent=1 // loop_body
      %s25 = ssub.s32 %s20, 1
      %s26 = ssub.s32 %s20, 2
      %s33 = sadd.s32 1, %s28
      %p34 = scmp.ge.s32.totalorder %s33, 2
      %s35 = scalar_select %p34, 0, %s33
      %s36 = sadd.s32 1, %s27
      %s37 = scalar_select %p34, %s36, %s27
      %p38 = scmp.ge.s32.totalorder %s37, 2
      %s39 = scalar_select %p38, 0, %s37
      %s40 = ssub.s32 %s27, %s39
      %p41 = scmp.eq.s32.totalorder %s40, 0
      %s43 = sadd.s32 %s42, 1
      %s44 = scalar_select %p41, %s42, %s43
      %p47 = pneg %p41
      %p48 = scmp.eq.s32.totalorder %s20, 3
      %p49 = por %p47, %p48
      %p50 = scmp.ne.s32.totalorder %s42, %s45
      %p51 = scmp.eq.s32.totalorder %s20, 0
      %p52 = por %p50, %p51
      %p53 = scmp.ne.s32.totalorder %s42, %s45
      %p54 = scmp.eq.s32.totalorder %s25, 3
      %p55 = por %p53, %p54
      %p56 = scmp.ne.s32.totalorder %s45, %s46
      %p57 = scmp.eq.s32.totalorder %s25, 0
      %p58 = por %p56, %p57
      %p59 = scmp.ne.s32.totalorder %s45, %s46
      %p60 = scmp.eq.s32.totalorder %s26, 3
      %p61 = por %p59, %p60
      %p63 = scmp.ne.s32.totalorder %s46, %s62
      %p64 = scmp.eq.s32.totalorder %s26, 0
      %p65 = por %p63, %p64
      %s66 = ssub.s32 %s28, %s35
      %p67 = scmp.eq.s32.totalorder %s66, 0
      %s69 = sadd.s32 %s68, 1
      %s70 = scalar_select %p67, %s68, %s69
      %p73 = pneg %p67
      %p74 = scmp.eq.s32.totalorder %s20, 3
      %p75 = por %p73, %p74
      %p76 = scmp.ne.s32.totalorder %s68, %s71
      %p77 = scmp.eq.s32.totalorder %s20, 0
      %p78 = por %p76, %p77
      %p79 = scmp.ne.s32.totalorder %s68, %s71
      %p80 = scmp.eq.s32.totalorder %s25, 3
      %p81 = por %p79, %p80
      %p82 = scmp.ne.s32.totalorder %s71, %s72
      %p83 = scmp.eq.s32.totalorder %s25, 0
      %p84 = por %p82, %p83
      %p85 = scmp.ne.s32.totalorder %s71, %s72
      %p86 = scmp.eq.s32.totalorder %s26, 3
      %p87 = por %p85, %p86
      %p89 = scmp.ne.s32.totalorder %s72, %s88
      %p90 = scmp.eq.s32.totalorder %s26, 0
      %p91 = por %p89, %p90
      %s93 = sadd.s32 %s92, 1
      %p96 = scmp.eq.s32.totalorder %s20, 3
      %p97 = scmp.ne.s32.totalorder %s92, %s94
      %p98 = scmp.eq.s32.totalorder %s20, 0
      %p99 = por %p97, %p98
      %p100 = scmp.ne.s32.totalorder %s92, %s94
      %p101 = scmp.eq.s32.totalorder %s25, 3
      %p102 = por %p100, %p101
      %p103 = scmp.ne.s32.totalorder %s94, %s95
      %p104 = scmp.eq.s32.totalorder %s25, 0
      %p105 = por %p103, %p104
      %p106 = scmp.ne.s32.totalorder %s94, %s95
      %p107 = scmp.eq.s32.totalorder %s26, 3
      %p108 = por %p106, %p107
      %p110 = scmp.ne.s32.totalorder %s95, %s109
      %p111 = scmp.eq.s32.totalorder %s26, 0
      %p112 = por %p110, %p111
      %s113 = ssub.s32 %s27, %s39
      %p114 = scmp.eq.s32.totalorder %s113, 0
      %s116 = sadd.s32 %s115, 1
      %s117 = scalar_select %p114, %s115, %s116
      %p120 = pneg %p114
      %p121 = scmp.eq.s32.totalorder %s20, 3
      %p122 = por %p120, %p121
      %p123 = scmp.ne.s32.totalorder %s115, %s118
      %p124 = scmp.eq.s32.totalorder %s20, 0
      %p125 = por %p123, %p124
      %p126 = scmp.ne.s32.totalorder %s115, %s118
      %p127 = scmp.eq.s32.totalorder %s25, 3
      %p128 = por %p126, %p127
      %p129 = scmp.ne.s32.totalorder %s118, %s119
      %p130 = scmp.eq.s32.totalorder %s25, 0
      %p131 = por %p129, %p130
      %p132 = scmp.ne.s32.totalorder %s118, %s119
      %p133 = scmp.eq.s32.totalorder %s26, 3
      %p134 = por %p132, %p133
      %p136 = scmp.ne.s32.totalorder %s119, %s135
      %p137 = scmp.eq.s32.totalorder %s26, 0
      %p138 = por %p136, %p137
      %s140 = sadd.s32 %s139, 1
      %p143 = scmp.eq.s32.totalorder %s20, 3
      %p144 = scmp.ne.s32.totalorder %s139, %s141
      %p145 = scmp.eq.s32.totalorder %s20, 0
      %p146 = por %p144, %p145
      %p147 = scmp.ne.s32.totalorder %s139, %s141
      %p148 = scmp.eq.s32.totalorder %s25, 3
      %p149 = por %p147, %p148
      %p150 = scmp.ne.s32.totalorder %s141, %s142
      %p151 = scmp.eq.s32.totalorder %s25, 0
      %p152 = por %p150, %p151
      %p153 = scmp.ne.s32.totalorder %s141, %s142
      %p154 = scmp.eq.s32.totalorder %s26, 3
      %p155 = por %p153, %p154
      %p157 = scmp.ne.s32.totalorder %s142, %s156
      %p158 = scmp.eq.s32.totalorder %s26, 0
      %p159 = por %p157, %p158
      %p160 = scmp.le.s32.totalorder 1, %s20
      %p161 = scmp.lt.s32.totalorder %s20, 5
      %p162 = pnand %p160, %p161
      %p163 = pneg %p162
      // Predicated region
      $region9: #{tpu_custom_call.1} parent=5 // pred_check
        _
      $region10: #{tpu_custom_call.1} parent=5 // pred_check_branch
        %165 = sbr.rel (%p162) target = $region12
      $region11: #{tpu_custom_call.1} parent=5 // pred_region
        %s166 = ssub.s32 %s20, 1
        // Predicated region
        $region13: #{tpu_custom_call.1} parent=11 // pred_check
          %p167 = pneg %p105
        $region14: #{tpu_custom_call.1} parent=11 // pred_check_branch
          %169 = sbr.rel (%p167) target = $region16
        $region15: #{tpu_custom_call.1} parent=11 // pred_region
          %s171 = ssub.s32 256, 256
          %172 = vsyncadd [#allocation12], %s171
          %s173 = sshll.u32 [#allocation13], 4
          %s174 = int_to_ptr.vmem [resolvable:$true] %s173
          %179 = dma.hbm_to_vmem [thread:$0]  %s2, 256, %s174, [#allocation12], 128, 128, 8
        $region16: #{tpu_custom_call.1} parent=11 // pred_fallthru
          _
      $region12: #{tpu_custom_call.1} parent=5 // pred_fallthru
        _
      %p180 = scmp.lt.s32.totalorder %s20, 4
      // Predicated region
      $region17: #{tpu_custom_call.1} parent=5 // pred_check
        %p181 = pneg %p180
      $region18: #{tpu_custom_call.1} parent=5 // pred_check_branch
        %183 = sbr.rel (%p181) target = $region20
      $region19: #{tpu_custom_call.1} parent=5 // pred_region
        // Predicated region
        $region21: #{tpu_custom_call.1} parent=19 // pred_check
          %p184 = pneg %p52
        $region22: #{tpu_custom_call.1} parent=19 // pred_check_branch
          %186 = sbr.rel (%p184) target = $region24
        $region23: #{tpu_custom_call.1} parent=19 // pred_region
          %s187 = sand.u32 %s42, 1
          %s188 = scalar_lea.sflag [#allocation9], %s187
          %s189 = sand.u32 %s42, 1
          %s190 = smul.addr %s189, 8
          %s191 = scalar_lea.vmem [#allocation8], %s190
          %s193 = ssub.s32 128, 128
          %194 = vsyncadd %s188, %s193
          %s195 = smul.addr %s27, 128
          %s196 = scalar_lea.hbm %s0, %s195
          %s198 = sshll.u32 %s191, 4
          %s199 = int_to_ptr.vmem [resolvable:$true] %s198
          %201 = dma.hbm_to_vmem [thread:$0]  %s196, 128, %s199, %s188
        $region24: #{tpu_custom_call.1} parent=19 // pred_fallthru
          _
        // Predicated region
        $region25: #{tpu_custom_call.1} parent=19 // pred_check
          %p202 = pneg %p78
        $region26: #{tpu_custom_call.1} parent=19 // pred_check_branch
          %204 = sbr.rel (%p202) target = $region28
        $region27: #{tpu_custom_call.1} parent=19 // pred_region
          %s205 = sand.u32 %s20, 1
          %s206 = scalar_lea.sflag [#allocation12], %s205
          %s207 = sand.u32 %s68, 1
          %s208 = smul.addr %s207, 8
          %s209 = scalar_lea.vmem [#allocation11], %s208
          %s211 = ssub.s32 128, 128
          %212 = vsyncadd %s206, %s211
          %s213 = smul.addr %s28, 128
          %s214 = scalar_lea.hbm %s1, %s213
          %s216 = sshll.u32 %s209, 4
          %s217 = int_to_ptr.vmem [resolvable:$true] %s216
          %219 = dma.hbm_to_vmem [thread:$0]  %s214, 128, %s217, %s206
        $region28: #{tpu_custom_call.1} parent=19 // pred_fallthru
          _
        // Predicated region
        $region29: #{tpu_custom_call.1} parent=19 // pred_check
          %p220 = pneg %p125
        $region30: #{tpu_custom_call.1} parent=19 // pred_check_branch
          %222 = sbr.rel (%p220) target = $region32
        $region31: #{tpu_custom_call.1} parent=19 // pred_region
          %s223 = sand.u32 %s115, 1
          %s224 = scalar_lea.sflag [#allocation15], %s223
          %s225 = sand.u32 %s115, 1
          %s226 = smul.addr %s225, 8
          %s227 = scalar_lea.vmem [#allocation14], %s226
          %s229 = ssub.s32 128, 128
          %230 = vsyncadd %s224, %s229
          %s231 = smul.addr %s27, 128
          %s232 = scalar_lea.hbm %s3, %s231
          %s234 = sshll.u32 %s227, 4
          %s235 = int_to_ptr.vmem [resolvable:$true] %s234
          %237 = dma.hbm_to_vmem [thread:$0]  %s232, 128, %s235, %s224
        $region32: #{tpu_custom_call.1} parent=19 // pred_fallthru
          _
      $region20: #{tpu_custom_call.1} parent=5 // pred_fallthru
        _
      %p238 = scmp.le.s32.totalorder 1, %s20
      %p239 = scmp.lt.s32.totalorder %s20, 5
      %p240 = pnand %p238, %p239
      %p241 = pneg %p240
      // Predicated region
      $region33: #{tpu_custom_call.1} parent=5 // pred_check
        _
      $region34: #{tpu_custom_call.1} parent=5 // pred_check_branch
        %243 = sbr.rel (%p240) target = $region36
      $region35: #{tpu_custom_call.1} parent=5 // pred_region
        %s244 = ssub.s32 %s20, 1
        %s245 = sand.u32 %s45, 1
        %s246 = scalar_lea.sflag [#allocation9], %s245
        %s247 = sand.u32 %s45, 1
        %s248 = smul.addr %s247, 8
        %s249 = scalar_lea.vmem [#allocation8], %s248
        // Predicated region
        $region37: #{tpu_custom_call.1} parent=35 // pred_check
          %p250 = pneg %p58
        $region38: #{tpu_custom_call.1} parent=35 // pred_check_branch
          %252 = sbr.rel (%p250) target = $region40
        $region39: #{tpu_custom_call.1} parent=35 // pred_region
          %253 = dma.done %s246, 128
        $region40: #{tpu_custom_call.1} parent=35 // pred_fallthru
          _
        %s254 = sand.u32 %s25, 1
        %s255 = scalar_lea.sflag [#allocation12], %s254
        %s256 = sand.u32 %s71, 1
        %s257 = smul.addr %s256, 8
        %s258 = scalar_lea.vmem [#allocation11], %s257
        // Predicated region
        $region41: #{tpu_custom_call.1} parent=35 // pred_check
          %p259 = pneg %p84
        $region42: #{tpu_custom_call.1} parent=35 // pred_check_branch
          %261 = sbr.rel (%p259) target = $region44
        $region43: #{tpu_custom_call.1} parent=35 // pred_region
          %262 = dma.done %s255, 128
        $region44: #{tpu_custom_call.1} parent=35 // pred_fallthru
          _
        // Predicated region
        $region45: #{tpu_custom_call.1} parent=35 // pred_check
          %p263 = pneg %p105
        $region46: #{tpu_custom_call.1} parent=35 // pred_check_branch
          %265 = sbr.rel (%p263) target = $region48
        $region47: #{tpu_custom_call.1} parent=35 // pred_region
          %266 = dma.done [#allocation12], 256
        $region48: #{tpu_custom_call.1} parent=35 // pred_fallthru
          _
        %s267 = sand.u32 %s118, 1
        %s268 = scalar_lea.sflag [#allocation15], %s267
        %s269 = sand.u32 %s118, 1
        %s270 = smul.addr %s269, 8
        %s271 = scalar_lea.vmem [#allocation14], %s270
        // Predicated region
        $region49: #{tpu_custom_call.1} parent=35 // pred_check
          %p272 = pneg %p131
        $region50: #{tpu_custom_call.1} parent=35 // pred_check_branch
          %274 = sbr.rel (%p272) target = $region52
        $region51: #{tpu_custom_call.1} parent=35 // pred_region
          %275 = dma.done %s268, 128
        $region52: #{tpu_custom_call.1} parent=35 // pred_fallthru
          _
        %s276 = sand.u32 %s45, 1
        %s277 = scalar_lea.sflag [#allocation9], %s276
        %s278 = sand.u32 %s45, 1
        %s279 = smul.addr %s278, 8
        %s280 = scalar_lea.vmem [#allocation8], %s279
        %p281 = pneg %p58
        %p282 = pneg %p55
        %s283 = sand.u32 %s25, 1
        %s284 = scalar_lea.sflag [#allocation12], %s283
        %s285 = sand.u32 %s71, 1
        %s286 = smul.addr %s285, 8
        %s287 = scalar_lea.vmem [#allocation11], %s286
        %p288 = pneg %p84
        %p289 = pneg %p81
        %p290 = pneg %p105
        %p291 = pneg %p102
        %s292 = sand.u32 %s118, 1
        %s293 = scalar_lea.sflag [#allocation15], %s292
        %s294 = sand.u32 %s118, 1
        %s295 = smul.addr %s294, 8
        %s296 = scalar_lea.vmem [#allocation14], %s295
        %p297 = pneg %p131
        %p298 = pneg %p128
        %p299 = pneg %p152
        %p300 = pneg %p149
        %p302 = scmp.eq.s32.totalorder %s29, 0
        %p303 = scmp.eq.s32.totalorder %s30, 0
        %p304 = pnand %p302, %p303
        %p305 = pneg %p304
        // Predicated region
        $region53: #{tpu_custom_call.1} parent=35 // pred_check
          _
        $region54: #{tpu_custom_call.1} parent=35 // pred_check_branch
          %307 = sbr.rel (%p304) target = $region56
        $region55: #{tpu_custom_call.1} parent=35 // pred_region
          %308 = vst [vmem:[#allocation4] sm:$0xff] 0.0
          %309 = vst [vmem:[#allocation4 + $0x8] sm:$0xff] 0.0
          %310 = vst [vmem:[#allocation4 + $0x10] sm:$0xff] 0.0
          %311 = vst [vmem:[#allocation4 + $0x18] sm:$0xff] 0.0
          %312 = vst [vmem:[#allocation4 + $0x20] sm:$0xff] 0.0
          %313 = vst [vmem:[#allocation4 + $0x28] sm:$0xff] 0.0
          %314 = vst [vmem:[#allocation4 + $0x30] sm:$0xff] 0.0
          %315 = vst [vmem:[#allocation4 + $0x38] sm:$0xff] 0.0
          %316 = vst [vmem:[#allocation4 + $0x40] sm:$0xff] 0.0
          %317 = vst [vmem:[#allocation4 + $0x48] sm:$0xff] 0.0
          %318 = vst [vmem:[#allocation4 + $0x50] sm:$0xff] 0.0
          %319 = vst [vmem:[#allocation4 + $0x58] sm:$0xff] 0.0
          %320 = vst [vmem:[#allocation4 + $0x60] sm:$0xff] 0.0
          %321 = vst [vmem:[#allocation4 + $0x68] sm:$0xff] 0.0
          %322 = vst [vmem:[#allocation4 + $0x70] sm:$0xff] 0.0
          %323 = vst [vmem:[#allocation4 + $0x78] sm:$0xff] 0.0
          %324 = vst [vmem:[#allocation5] sm:$0x1] 0.0
          %325 = vst [vmem:[#allocation6] sm:$0x1] 0.0
          %326 = vst [vmem:[#allocation7] sm:$0x1] 0.0
        $region56: #{tpu_custom_call.1} parent=35 // pred_fallthru
          _
        // Predicated region
        $region57: #{tpu_custom_call.1} parent=35 // pred_check
          %p327 = pneg %p303
        $region58: #{tpu_custom_call.1} parent=35 // pred_check_branch
          %329 = sbr.rel (%p327) target = $region60
        $region59: #{tpu_custom_call.1} parent=35 // pred_region
          %vm330 = vcmask 7168
          %331 = vst.msk [vmem:[#allocation2] sm:$0xff] %vm330, -inf
          %332 = vst.msk [vmem:[#allocation3] sm:$0xff] %vm330, 0
        $region60: #{tpu_custom_call.1} parent=35 // pred_fallthru
          _
        %v333 = vld [vmem:[%s249] sm:$0xff]
        %v334 = vld [vmem:[%s258] sm:$0xff]
        %v335 = vmul.f32 %v333, %v333
        %vm336 = vcmask 261120
        %v337 = vsel %vm336, %v335, 0.0
        %338 = vadd.xlane.f32.xlu0 %v337
        %v339 = vpop.xlane.xlu0 %338
        %v340 = vadd.f32 %v339, 1e-12
        %v341 = vrsqrt.pop %v340
        %v342 = vmul.f32 %v333, %v341
        %v343 = vmul.f32 %v334, %v334
        %v344 = vsel %vm336, %v343, 0.0
        %345 = vadd.xlane.f32.xlu0 %v344
        %v346 = vpop.xlane.xlu0 %345
        %v347 = vadd.f32 %v346, 1e-12
        %v348 = vrsqrt.pop %v347
        %v349 = vmul.f32 %v334, %v348
        %v350 = vpack.c.bf16 %v342, %v342
        %v351 = vpack.c.bf16 %v349, %v349
        %v353 = vsel %vm336, %v350, 0
        %v356 = vsel %vm336, %v351, 0
        %358 = vmatprep.subr.bf16.mxu0 0
        %359 = vmatpush1.bf16.xpose.msra.mxu0 %v356
        %360 = vmatprep.subr.bf16.mxu0 0
        %361 = vmatpush1.bf16.xpose.msra.mxu0 0
        %362 = vmatprep.subr.bf16.mxu0 0
        %363 = vmatpush1.bf16.xpose.msra.mxu0 0
        %364 = vmatprep.subr.bf16.mxu0 0
        %365 = vmatpush1.bf16.xpose.msra.mxu0 0
        %366 = vmatprep.subr.bf16.mxu0 0
        %367 = vmatpush1.bf16.xpose.msra.mxu0 0
        %368 = vmatprep.subr.bf16.mxu0 0
        %369 = vmatpush1.bf16.xpose.msra.mxu0 0
        %370 = vmatprep.subr.bf16.mxu0 0
        %371 = vmatpush1.bf16.xpose.msra.mxu0 0
        %372 = vmatprep.subr.bf16.mxu0 0
        %373 = vmatpush1.bf16.xpose.msra.mxu0 0
        %374 = vmatprep.subr.bf16.mxu0 0
        %375 = vmatpush1.bf16.xpose.msra.mxu0 0
        %376 = vmatprep.subr.bf16.mxu0 0
        %377 = vmatpush1.bf16.xpose.msra.mxu0 0
        %378 = vmatprep.subr.bf16.mxu0 0
        %379 = vmatpush1.bf16.xpose.msra.mxu0 0
        %380 = vmatprep.subr.bf16.mxu0 0
        %381 = vmatpush1.bf16.xpose.msra.mxu0 0
        %382 = vmatprep.subr.bf16.mxu0 0
        %383 = vmatpush1.bf16.xpose.msra.mxu0 0
        %384 = vmatprep.subr.bf16.mxu0 0
        %385 = vmatpush1.bf16.xpose.msra.mxu0 0
        %386 = vmatprep.subr.bf16.mxu0 0
        %387 = vmatpush1.bf16.xpose.msra.mxu0 0
        %388 = vmatprep.subr.bf16.mxu0 0
        %389 = vmatpush1.bf16.xpose.msra.mxu0 0
        %390 = vmatprep.mubr.bf16.mxu0 0
        %391 = vmatmul.mubr.bf16.gmra.mrb[0].mxu0 %v353
        %v392 = vpop.f32.mrb[0].mxu0
        %v393 = vadd.f32 0.0, %v392
        %v394 = vpop.f32.mrb[0].mxu0
        %v395 = vpop.f32.mrb[0].mxu0
        %v396 = vpop.f32.mrb[0].mxu0
        %397 = vdwg.mxu0
        %v398 = vlaneseq
        %v399 = vand.u32 %v398, 127
        %v400 = vlaneseq
        %v401 = vshrl.u32 %v400, 7
        %s402 = ssub.s32 %s29, %s30
        %s403 = smul.u32 %s402, 8
        %v404 = vstv %s403
        %v405 = vadd.s32 %v401, %v404
        %vm406 = vcmp.eq.s32.totalorder %v399, %v405
        %v407 = vsel %vm406, -1e+30, %v393
        %vm408 = vcmask 64512
        %v409 = vsel %vm408, %v407, -inf
        %410 = vmax.xlane.f32.xlu0 %v409
        %v411 = vpop.xlane.xlu0 %410
        %vm412 = vcmp.eq.f32.partialorder %v407, %v411
        %v413 = vsel %vm412, %v399, 8
        %v414 = vsel %vm408, %v413, 2147483647
        %v415 = vand.u32 %v414, 65535
        %v416 = vshra.s32 %v414, 16
        %v417 = vcvt.s32.f32 %v415
        %v418 = vcvt.s32.f32 %v416
        %419 = vmin.xlane.f32.xlu0 %v418
        %v420 = vpop.xlane.xlu0 %419
        %vm421 = vcmp.eq.f32.partialorder %v418, %v420
        %v422 = vsel %vm421, %v417, inf
        %423 = vmin.xlane.f32.xlu0 %v422
        %v424 = vpop.xlane.xlu0 %423
        %v425 = vcvt.f32.s32 %v424
        %v426 = vcvt.f32.s32 %v420
        %v427 = vshll.u32 %v426, 16
        %v428 = vadd.s32 %v427, %v425
        %v429 = vld [vmem:[#allocation2] sm:$0xff]
        %vm430 = vcmp.gt.f32.partialorder %v411, %v429
        %v431 = vsel %vm430, %v411, %v429
        %vm432 = vcmask 7168
        %433 = vst.msk [vmem:[#allocation2] sm:$0xff] %vm432, %v431
        %s434 = smul.u32 %s30, 8
        %v435 = vstv %s434
        %v436 = vadd.s32 %v428, %v435
        %v437 = vld [vmem:[#allocation3] sm:$0xff]
        %v438 = vsel %vm430, %v436, %v437
        %439 = vst.msk [vmem:[#allocation3] sm:$0xff] %vm432, %v438
        %p440 = scmp.eq.s32.totalorder %s30, 1
        // Predicated region
        $region61: #{tpu_custom_call.1} parent=35 // pred_check
          %p441 = pneg %p440
        $region62: #{tpu_custom_call.1} parent=35 // pred_check_branch
          %443 = sbr.rel (%p441) target = $region64
        $region63: #{tpu_custom_call.1} parent=35 // pred_region
          %v444 = vld [vmem:[#allocation3] sm:$0xff]
          %445 = vset.pattern.permute.xlu0 0
          %446 = vperm.xlu0 %445, %v444
          %v447 = vpop.permute.xlu0 %446
          %vm448 = vcmp.eq.s32.totalorder %v399, %v447
          %v449 = vsel %vm448, 1, 0
          %v450 = vcvt.s32.f32 %v449
          %v451 = vld [vmem:[#allocation13] sm:$0xff]
          %v452 = vld [vmem:[#allocation13 + $0x8] sm:$0xff]
          %vm453 = vcmask 130048
          %v455 = vsel %vm453, %v450, 0
          %457 = vmatprep.subr.mxu0 0.0
          %458 = vmatpush1.msra.mxu0 %v451
          %459 = vmatprep.subr.mxu0 0.0
          %460 = vmatpush1.msra.mxu0 %v452
          %461 = vmatprep.subr.mxu0 0.0
          %462 = vmatpush1.msra.mxu0 0.0
          %463 = vmatprep.subr.mxu0 0.0
          %464 = vmatpush1.msra.mxu0 0.0
          %465 = vmatprep.subr.mxu0 0.0
          %466 = vmatpush1.msra.mxu0 0.0
          %467 = vmatprep.subr.mxu0 0.0
          %468 = vmatpush1.msra.mxu0 0.0
          %469 = vmatprep.subr.mxu0 0.0
          %470 = vmatpush1.msra.mxu0 0.0
          %471 = vmatprep.subr.mxu0 0.0
          %472 = vmatpush1.msra.mxu0 0.0
          %473 = vmatprep.subr.mxu0 0.0
          %474 = vmatpush1.msra.mxu0 0.0
          %475 = vmatprep.subr.mxu0 0.0
          %476 = vmatpush1.msra.mxu0 0.0
          %477 = vmatprep.subr.mxu0 0.0
          %478 = vmatpush1.msra.mxu0 0.0
          %479 = vmatprep.subr.mxu0 0.0
          %480 = vmatpush1.msra.mxu0 0.0
          %481 = vmatprep.subr.mxu0 0.0
          %482 = vmatpush1.msra.mxu0 0.0
          %483 = vmatprep.subr.mxu0 0.0
          %484 = vmatpush1.msra.mxu0 0.0
          %485 = vmatprep.subr.mxu0 0.0
          %486 = vmatpush1.msra.mxu0 0.0
          %487 = vmatprep.subr.mxu0 0.0
          %488 = vmatpush1.msra.mxu0 0.0
          %489 = vmatprep.subr.mxu0 0.0
          %490 = vmatpush1.msra.mxu0 0.0
          %491 = vmatprep.subr.mxu0 0.0
          %492 = vmatpush1.msra.mxu0 0.0
          %493 = vmatprep.subr.mxu0 0.0
          %494 = vmatpush1.msra.mxu0 0.0
          %495 = vmatprep.subr.mxu0 0.0
          %496 = vmatpush1.msra.mxu0 0.0
          %497 = vmatprep.subr.mxu0 0.0
          %498 = vmatpush1.msra.mxu0 0.0
          %499 = vmatprep.subr.mxu0 0.0
          %500 = vmatpush1.msra.mxu0 0.0
          %501 = vmatprep.subr.mxu0 0.0
          %502 = vmatpush1.msra.mxu0 0.0
          %503 = vmatprep.subr.mxu0 0.0
          %504 = vmatpush1.msra.mxu0 0.0
          %505 = vmatprep.subr.mxu0 0.0
          %506 = vmatpush1.msra.mxu0 0.0
          %507 = vmatprep.subr.mxu0 0.0
          %508 = vmatpush1.msra.mxu0 0.0
          %509 = vmatprep.subr.mxu0 0.0
          %510 = vmatpush1.msra.mxu0 0.0
          %511 = vmatprep.subr.mxu0 0.0
          %512 = vmatpush1.msra.mxu0 0.0
          %513 = vmatprep.subr.mxu0 0.0
          %514 = vmatpush1.msra.mxu0 0.0
          %515 = vmatprep.subr.mxu0 0.0
          %516 = vmatpush1.msra.mxu0 0.0
          %517 = vmatprep.subr.mxu0 0.0
          %518 = vmatpush1.msra.mxu0 0.0
          %519 = vmatprep.subr.mxu0 0.0
          %520 = vmatpush1.msra.mxu0 0.0
          %521 = vmatprep.mubr.f32.mxu0 0.0
          %522 = vmatmul.mubr.f32.gmra.mrb[0].mxu0 %v455
          %v523 = vpop.f32.mrb[0].mxu0
          %v524 = vadd.f32 0.0, %v523
          %v525 = vpop.f32.mrb[0].mxu0
          %526 = vdwg.mxu0
          %v527 = vld [vmem:[%s271] sm:$0xff]
          %528 = vmax.xlane.f32.xlu0 %v527
          %v529 = vpop.xlane.xlu0 %528
          %v530 = vsub.f32 %v527, %v529
          %v531 = vmul.f32 %v530, 1.442695
          %v532 = vpow.pop %v531
          %533 = vadd.xlane.f32.xlu0 %v532
          %v534 = vpop.xlane.xlu0 %533
          %v535 = vrcp.pop %v534
          %v536 = vmul.f32 %v532, %v535
          %537 = vmax.xlane.f32.xlu0 %v524
          %v538 = vpop.xlane.xlu0 %537
          %v539 = vsub.f32 %v524, %v538
          %v540 = vmul.f32 %v539, 1.442695
          %v541 = vpow.pop %v540
          %542 = vadd.xlane.f32.xlu0 %v541
          %v543 = vpop.xlane.xlu0 %542
          %v544 = vrcp.pop %v543
          %v545 = vmul.f32 %v541, %v544
          %v546 = vld [vmem:[#allocation4] sm:$0xff]
          %v547 = vld [vmem:[#allocation4 + $0x8] sm:$0xff]
          %v548 = vld [vmem:[#allocation4 + $0x10] sm:$0xff]
          %v549 = vld [vmem:[#allocation4 + $0x18] sm:$0xff]
          %v550 = vld [vmem:[#allocation4 + $0x20] sm:$0xff]
          %v551 = vld [vmem:[#allocation4 + $0x28] sm:$0xff]
          %v552 = vld [vmem:[#allocation4 + $0x30] sm:$0xff]
          %v553 = vld [vmem:[#allocation4 + $0x38] sm:$0xff]
          %v554 = vld [vmem:[#allocation4 + $0x40] sm:$0xff]
          %v555 = vld [vmem:[#allocation4 + $0x48] sm:$0xff]
          %v556 = vld [vmem:[#allocation4 + $0x50] sm:$0xff]
          %v557 = vld [vmem:[#allocation4 + $0x58] sm:$0xff]
          %v558 = vld [vmem:[#allocation4 + $0x60] sm:$0xff]
          %v559 = vld [vmem:[#allocation4 + $0x68] sm:$0xff]
          %v560 = vld [vmem:[#allocation4 + $0x70] sm:$0xff]
          %v561 = vld [vmem:[#allocation4 + $0x78] sm:$0xff]
          %562 = vxpose.xlu0.b32.start [1/16] %v536, 128
          %563 = vxpose.xlu0.b32.cont [2/16] 0.0, 128
          %564 = vxpose.xlu0.b32.cont [3/16] 0.0, 128
          %565 = vxpose.xlu0.b32.cont [4/16] 0.0, 128
          %566 = vxpose.xlu0.b32.cont [5/16] 0.0, 128
          %567 = vxpose.xlu0.b32.cont [6/16] 0.0, 128
          %568 = vxpose.xlu0.b32.cont [7/16] 0.0, 128
          %569 = vxpose.xlu0.b32.cont [8/16] 0.0, 128
          %570 = vxpose.xlu0.b32.cont [9/16] 0.0, 128
          %571 = vxpose.xlu0.b32.cont [10/16] 0.0, 128
          %572 = vxpose.xlu0.b32.cont [11/16] 0.0, 128
          %573 = vxpose.xlu0.b32.cont [12/16] 0.0, 128
          %574 = vxpose.xlu0.b32.cont [13/16] 0.0, 128
          %575 = vxpose.xlu0.b32.cont [14/16] 0.0, 128
          %576 = vxpose.xlu0.b32.cont [15/16] 0.0, 128
          %577 = vxpose.xlu0.b32.end [16/16] 0.0, 128
          %v578 = vpop.trf.xlu0
          %v579 = vpop.trf.xlu0
          %v580 = vpop.trf.xlu0
          %v581 = vpop.trf.xlu0
          %v582 = vpop.trf.xlu0
          %v583 = vpop.trf.xlu0
          %v584 = vpop.trf.xlu0
          %v585 = vpop.trf.xlu0
          %v586 = vpop.trf.xlu0
          %v587 = vpop.trf.xlu0
          %v588 = vpop.trf.xlu0
          %v589 = vpop.trf.xlu0
          %v590 = vpop.trf.xlu0
          %v591 = vpop.trf.xlu0
          %v592 = vpop.trf.xlu0
          %v593 = vpop.trf.xlu0
          %v595 = vsel %vm408, %v578, 0
          %v598 = vsel %vm408, %v579, 0
          %v601 = vsel %vm408, %v580, 0
          %v604 = vsel %vm408, %v581, 0
          %v607 = vsel %vm408, %v582, 0
          %v610 = vsel %vm408, %v583, 0
          %v613 = vsel %vm408, %v584, 0
          %v616 = vsel %vm408, %v585, 0
          %v619 = vsel %vm408, %v586, 0
          %v622 = vsel %vm408, %v587, 0
          %v625 = vsel %vm408, %v588, 0
          %v628 = vsel %vm408, %v589, 0
          %v631 = vsel %vm408, %v590, 0
          %v634 = vsel %vm408, %v591, 0
          %v637 = vsel %vm408, %v592, 0
          %v640 = vsel %vm408, %v593, 0
          %642 = vmatprep.subr.mxu0 0.0
          %643 = vmatpush1.msra.mxu0 %v545
          %644 = vmatprep.subr.mxu0 0.0
          %645 = vmatpush1.msra.mxu0 0.0
          %646 = vmatprep.subr.mxu0 0.0
          %647 = vmatpush1.msra.mxu0 0.0
          %648 = vmatprep.subr.mxu0 0.0
          %649 = vmatpush1.msra.mxu0 0.0
          %650 = vmatprep.subr.mxu0 0.0
          %651 = vmatpush1.msra.mxu0 0.0
          %652 = vmatprep.subr.mxu0 0.0
          %653 = vmatpush1.msra.mxu0 0.0
          %654 = vmatprep.subr.mxu0 0.0
          %655 = vmatpush1.msra.mxu0 0.0
          %656 = vmatprep.subr.mxu0 0.0
          %657 = vmatpush1.msra.mxu0 0.0
          %658 = vmatprep.subr.mxu0 0.0
          %659 = vmatpush1.msra.mxu0 0.0
          %660 = vmatprep.subr.mxu0 0.0
          %661 = vmatpush1.msra.mxu0 0.0
          %662 = vmatprep.subr.mxu0 0.0
          %663 = vmatpush1.msra.mxu0 0.0
          %664 = vmatprep.subr.mxu0 0.0
          %665 = vmatpush1.msra.mxu0 0.0
          %666 = vmatprep.subr.mxu0 0.0
          %667 = vmatpush1.msra.mxu0 0.0
          %668 = vmatprep.subr.mxu0 0.0
          %669 = vmatpush1.msra.mxu0 0.0
          %670 = vmatprep.subr.mxu0 0.0
          %671 = vmatpush1.msra.mxu0 0.0
          %672 = vmatprep.subr.mxu0 0.0
          %673 = vmatpush1.msra.mxu0 0.0
          %674 = vmatprep.subr.mxu0 0.0
          %675 = vmatpush1.msra.mxu0 0.0
          %676 = vmatprep.subr.mxu0 0.0
          %677 = vmatpush1.msra.mxu0 0.0
          %678 = vmatprep.subr.mxu0 0.0
          %679 = vmatpush1.msra.mxu0 0.0
          %680 = vmatprep.subr.mxu0 0.0
          %681 = vmatpush1.msra.mxu0 0.0
          %682 = vmatprep.subr.mxu0 0.0
          %683 = vmatpush1.msra.mxu0 0.0
          %684 = vmatprep.subr.mxu0 0.0
          %685 = vmatpush1.msra.mxu0 0.0
          %686 = vmatprep.subr.mxu0 0.0
          %687 = vmatpush1.msra.mxu0 0.0
          %688 = vmatprep.subr.mxu0 0.0
          %689 = vmatpush1.msra.mxu0 0.0
          %690 = vmatprep.subr.mxu0 0.0
          %691 = vmatpush1.msra.mxu0 0.0
          %692 = vmatprep.subr.mxu0 0.0
          %693 = vmatpush1.msra.mxu0 0.0
          %694 = vmatprep.subr.mxu0 0.0
          %695 = vmatpush1.msra.mxu0 0.0
          %696 = vmatprep.subr.mxu0 0.0
          %697 = vmatpush1.msra.mxu0 0.0
          %698 = vmatprep.subr.mxu0 0.0
          %699 = vmatpush1.msra.mxu0 0.0
          %700 = vmatprep.subr.mxu0 0.0
          %701 = vmatpush1.msra.mxu0 0.0
          %702 = vmatprep.subr.mxu0 0.0
          %703 = vmatpush1.msra.mxu0 0.0
          %704 = vmatprep.subr.mxu0 0.0
          %705 = vmatpush1.msra.mxu0 0.0
          %706 = vmatprep.mubr.f32.mxu0 0.0
          %707 = vmatmul.mubr.f32.gmra.mrb[0].mxu0 %v595
          %v708 = vpop.f32.mrb[0].mxu0
          %v709 = vadd.f32 0.0, %v708
          %v710 = vpop.f32.mrb[0].mxu0
          %711 = vmatprep.mubr.f32.mxu0 0.0
          %712 = vmatmul.mubr.f32.gmra.mrb[0].mxu0 %v598
          %v713 = vpop.f32.mrb[0].mxu0
          %v714 = vadd.f32 0.0, %v713
          %v715 = vpop.f32.mrb[0].mxu0
          %716 = vmatprep.mubr.f32.mxu0 0.0
          %717 = vmatmul.mubr.f32.gmra.mrb[0].mxu0 %v601
          %v718 = vpop.f32.mrb[0].mxu0
          %v719 = vadd.f32 0.0, %v718
          %v720 = vpop.f32.mrb[0].mxu0
          %721 = vmatprep.mubr.f32.mxu0 0.0
          %722 = vmatmul.mubr.f32.gmra.mrb[0].mxu0 %v604
          %v723 = vpop.f32.mrb[0].mxu0
          %v724 = vadd.f32 0.0, %v723
          %v725 = vpop.f32.mrb[0].mxu0
          %726 = vmatprep.mubr.f32.mxu0 0.0
          %727 = vmatmul.mubr.f32.gmra.mrb[0].mxu0 %v607
          %v728 = vpop.f32.mrb[0].mxu0
          %v729 = vadd.f32 0.0, %v728
          %v730 = vpop.f32.mrb[0].mxu0
          %731 = vmatprep.mubr.f32.mxu0 0.0
          %732 = vmatmul.mubr.f32.gmra.mrb[0].mxu0 %v610
          %v733 = vpop.f32.mrb[0].mxu0
          %v734 = vadd.f32 0.0, %v733
          %v735 = vpop.f32.mrb[0].mxu0
          %736 = vmatprep.mubr.f32.mxu0 0.0
          %737 = vmatmul.mubr.f32.gmra.mrb[0].mxu0 %v613
          %v738 = vpop.f32.mrb[0].mxu0
          %v739 = vadd.f32 0.0, %v738
          %v740 = vpop.f32.mrb[0].mxu0
          %741 = vmatprep.mubr.f32.mxu0 0.0
          %742 = vmatmul.mubr.f32.gmra.mrb[0].mxu0 %v616
          %v743 = vpop.f32.mrb[0].mxu0
          %v744 = vadd.f32 0.0, %v743
          %v745 = vpop.f32.mrb[0].mxu0
          %746 = vmatprep.mubr.f32.mxu0 0.0
          %747 = vmatmul.mubr.f32.gmra.mrb[0].mxu0 %v619
          %v748 = vpop.f32.mrb[0].mxu0
          %v749 = vadd.f32 0.0, %v748
          %v750 = vpop.f32.mrb[0].mxu0
          %751 = vmatprep.mubr.f32.mxu0 0.0
          %752 = vmatmul.mubr.f32.gmra.mrb[0].mxu0 %v622
          %v753 = vpop.f32.mrb[0].mxu0
          %v754 = vadd.f32 0.0, %v753
          %v755 = vpop.f32.mrb[0].mxu0
          %756 = vmatprep.mubr.f32.mxu0 0.0
          %757 = vmatmul.mubr.f32.gmra.mrb[0].mxu0 %v625
          %v758 = vpop.f32.mrb[0].mxu0
          %v759 = vadd.f32 0.0, %v758
          %v760 = vpop.f32.mrb[0].mxu0
          %761 = vmatprep.mubr.f32.mxu0 0.0
          %762 = vmatmul.mubr.f32.gmra.mrb[0].mxu0 %v628
          %v763 = vpop.f32.mrb[0].mxu0
          %v764 = vadd.f32 0.0, %v763
          %v765 = vpop.f32.mrb[0].mxu0
          %766 = vmatprep.mubr.f32.mxu0 0.0
          %767 = vmatmul.mubr.f32.gmra.mrb[0].mxu0 %v631
          %v768 = vpop.f32.mrb[0].mxu0
          %v769 = vadd.f32 0.0, %v768
          %v770 = vpop.f32.mrb[0].mxu0
          %771 = vmatprep.mubr.f32.mxu0 0.0
          %772 = vmatmul.mubr.f32.gmra.mrb[0].mxu0 %v634
          %v773 = vpop.f32.mrb[0].mxu0
          %v774 = vadd.f32 0.0, %v773
          %v775 = vpop.f32.mrb[0].mxu0
          %776 = vmatprep.mubr.f32.mxu0 0.0
          %777 = vmatmul.mubr.f32.gmra.mrb[0].mxu0 %v637
          %v778 = vpop.f32.mrb[0].mxu0
          %v779 = vadd.f32 0.0, %v778
          %v780 = vpop.f32.mrb[0].mxu0
          %781 = vmatprep.mubr.f32.mxu0 0.0
          %782 = vmatmul.mubr.f32.gmra.mrb[0].mxu0 %v640
          %v783 = vpop.f32.mrb[0].mxu0
          %v784 = vadd.f32 0.0, %v783
          %v785 = vpop.f32.mrb[0].mxu0
          %786 = vdwg.mxu0
          %v787 = vadd.f32 %v546, %v709
          %v788 = vadd.f32 %v547, %v714
          %v789 = vadd.f32 %v548, %v719
          %v790 = vadd.f32 %v549, %v724
          %v791 = vadd.f32 %v550, %v729
          %v792 = vadd.f32 %v551, %v734
          %v793 = vadd.f32 %v552, %v739
          %v794 = vadd.f32 %v553, %v744
          %v795 = vadd.f32 %v554, %v749
          %v796 = vadd.f32 %v555, %v754
          %v797 = vadd.f32 %v556, %v759
          %v798 = vadd.f32 %v557, %v764
          %v799 = vadd.f32 %v558, %v769
          %v800 = vadd.f32 %v559, %v774
          %v801 = vadd.f32 %v560, %v779
          %v802 = vadd.f32 %v561, %v784
          %803 = vst [vmem:[#allocation4] sm:$0xff] %v787
          %804 = vst [vmem:[#allocation4 + $0x8] sm:$0xff] %v788
          %805 = vst [vmem:[#allocation4 + $0x10] sm:$0xff] %v789
          %806 = vst [vmem:[#allocation4 + $0x18] sm:$0xff] %v790
          %807 = vst [vmem:[#allocation4 + $0x20] sm:$0xff] %v791
          %808 = vst [vmem:[#allocation4 + $0x28] sm:$0xff] %v792
          %809 = vst [vmem:[#allocation4 + $0x30] sm:$0xff] %v793
          %810 = vst [vmem:[#allocation4 + $0x38] sm:$0xff] %v794
          %811 = vst [vmem:[#allocation4 + $0x40] sm:$0xff] %v795
          %812 = vst [vmem:[#allocation4 + $0x48] sm:$0xff] %v796
          %813 = vst [vmem:[#allocation4 + $0x50] sm:$0xff] %v797
          %814 = vst [vmem:[#allocation4 + $0x58] sm:$0xff] %v798
          %815 = vst [vmem:[#allocation4 + $0x60] sm:$0xff] %v799
          %816 = vst [vmem:[#allocation4 + $0x68] sm:$0xff] %v800
          %817 = vst [vmem:[#allocation4 + $0x70] sm:$0xff] %v801
          %818 = vst [vmem:[#allocation4 + $0x78] sm:$0xff] %v802
          %v819 = vld [vmem:[#allocation5] sm:$0x1]
          %v820 = vmul.f32 %v536, %v536
          %v821 = vrot.slane %v820, 4
          %v822 = vadd.f32 %v820, %v821
          %v823 = vrot.slane %v822, 2
          %v824 = vadd.f32 %v822, %v823
          %v825 = vrot.slane %v824, 1
          %v826 = vadd.f32 %v824, %v825
          %v827 = vadd.f32 %v819, %v826
          %828 = vst [vmem:[#allocation5] sm:$0x1] %v827
          %v829 = vld [vmem:[#allocation6] sm:$0x1]
          %v830 = vmul.f32 %v545, %v545
          %v831 = vrot.slane %v830, 4
          %v832 = vadd.f32 %v830, %v831
          %v833 = vrot.slane %v832, 2
          %v834 = vadd.f32 %v832, %v833
          %v835 = vrot.slane %v834, 1
          %v836 = vadd.f32 %v834, %v835
          %v837 = vadd.f32 %v829, %v836
          %838 = vst [vmem:[#allocation6] sm:$0x1] %v837
          %v839 = vld [vmem:[#allocation7] sm:$0x1]
          %v840 = vrot.slane %v536, 4
          %v841 = vadd.f32 %v536, %v840
          %v842 = vrot.slane %v841, 2
          %v843 = vadd.f32 %v841, %v842
          %v844 = vrot.slane %v843, 1
          %v845 = vadd.f32 %v843, %v844
          %v846 = vadd.f32 %v839, %v845
          %847 = vst [vmem:[#allocation7] sm:$0x1] %v846
        $region64: #{tpu_custom_call.1} parent=35 // pred_fallthru
          _
        %p848 = scmp.eq.s32.totalorder %s29, 1
        %p849 = pnand %p848, %p440
        %p850 = pneg %p849
        // Predicated region
        $region65: #{tpu_custom_call.1} parent=35 // pred_check
          _
        $region66: #{tpu_custom_call.1} parent=35 // pred_check_branch
          %852 = sbr.rel (%p849) target = $region68
        $region67: #{tpu_custom_call.1} parent=35 // pred_region
          %v853 = vadd.s32 %v401, 8
          %v854 = vadd.s32 %v401, 16
          %v855 = vadd.s32 %v401, 24
          %v856 = vadd.s32 %v401, 32
          %v857 = vadd.s32 %v401, 40
          %v858 = vadd.s32 %v401, 48
          %v859 = vadd.s32 %v401, 56
          %v860 = vadd.s32 %v401, 64
          %v861 = vadd.s32 %v401, 72
          %v862 = vadd.s32 %v401, 80
          %v863 = vadd.s32 %v401, 88
          %v864 = vadd.s32 %v401, 96
          %v865 = vadd.s32 %v401, 104
          %v866 = vadd.s32 %v401, 112
          %v867 = vadd.s32 %v401, 120
          %vm868 = vcmp.eq.s32.totalorder %v401, %v399
          %vm869 = vcmp.eq.s32.totalorder %v853, %v399
          %vm870 = vcmp.eq.s32.totalorder %v854, %v399
          %vm871 = vcmp.eq.s32.totalorder %v855, %v399
          %vm872 = vcmp.eq.s32.totalorder %v856, %v399
          %vm873 = vcmp.eq.s32.totalorder %v857, %v399
          %vm874 = vcmp.eq.s32.totalorder %v858, %v399
          %vm875 = vcmp.eq.s32.totalorder %v859, %v399
          %vm876 = vcmp.eq.s32.totalorder %v860, %v399
          %vm877 = vcmp.eq.s32.totalorder %v861, %v399
          %vm878 = vcmp.eq.s32.totalorder %v862, %v399
          %vm879 = vcmp.eq.s32.totalorder %v863, %v399
          %vm880 = vcmp.eq.s32.totalorder %v864, %v399
          %vm881 = vcmp.eq.s32.totalorder %v865, %v399
          %vm882 = vcmp.eq.s32.totalorder %v866, %v399
          %vm883 = vcmp.eq.s32.totalorder %v867, %v399
          %v884 = vld [vmem:[#allocation5] sm:$0x1]
          %v885 = vmax.f32 %v884, 1e-24
          %v886 = vrsqrt.pop %v885
          %v887 = vld [vmem:[#allocation6] sm:$0x1]
          %v888 = vmax.f32 %v887, 1e-24
          %v889 = vrsqrt.pop %v888
          %v891 = vlaneseq
          %v892 = vshrl.u32 %v891, 7
          %v893 = vsub.s32 0, %v892
          %v894 = vrot.slane %v886, %v893
          %v896 = vsel %vm868, %v894, 0.0
          %v897 = vsel %vm869, %v894, 0.0
          %v898 = vsel %vm870, %v894, 0.0
          %v899 = vsel %vm871, %v894, 0.0
          %v900 = vsel %vm872, %v894, 0.0
          %v901 = vsel %vm873, %v894, 0.0
          %v902 = vsel %vm874, %v894, 0.0
          %v903 = vsel %vm875, %v894, 0.0
          %v904 = vsel %vm876, %v894, 0.0
          %v905 = vsel %vm877, %v894, 0.0
          %v906 = vsel %vm878, %v894, 0.0
          %v907 = vsel %vm879, %v894, 0.0
          %v908 = vsel %vm880, %v894, 0.0
          %v909 = vsel %vm881, %v894, 0.0
          %v910 = vsel %vm882, %v894, 0.0
          %v911 = vsel %vm883, %v894, 0.0
          %912 = vadd.xlane.f32.xlu0 %v896
          %v913 = vpop.xlane.xlu0 %912
          %914 = vadd.xlane.f32.xlu0 %v897
          %v915 = vpop.xlane.xlu0 %914
          %916 = vadd.xlane.f32.xlu0 %v898
          %v917 = vpop.xlane.xlu0 %916
          %918 = vadd.xlane.f32.xlu0 %v899
          %v919 = vpop.xlane.xlu0 %918
          %920 = vadd.xlane.f32.xlu0 %v900
          %v921 = vpop.xlane.xlu0 %920
          %922 = vadd.xlane.f32.xlu0 %v901
          %v923 = vpop.xlane.xlu0 %922
          %924 = vadd.xlane.f32.xlu0 %v902
          %v925 = vpop.xlane.xlu0 %924
          %926 = vadd.xlane.f32.xlu0 %v903
          %v927 = vpop.xlane.xlu0 %926
          %928 = vadd.xlane.f32.xlu0 %v904
          %v929 = vpop.xlane.xlu0 %928
          %930 = vadd.xlane.f32.xlu0 %v905
          %v931 = vpop.xlane.xlu0 %930
          %932 = vadd.xlane.f32.xlu0 %v906
          %v933 = vpop.xlane.xlu0 %932
          %934 = vadd.xlane.f32.xlu0 %v907
          %v935 = vpop.xlane.xlu0 %934
          %936 = vadd.xlane.f32.xlu0 %v908
          %v937 = vpop.xlane.xlu0 %936
          %938 = vadd.xlane.f32.xlu0 %v909
          %v939 = vpop.xlane.xlu0 %938
          %940 = vadd.xlane.f32.xlu0 %v910
          %v941 = vpop.xlane.xlu0 %940
          %942 = vadd.xlane.f32.xlu0 %v911
          %v943 = vpop.xlane.xlu0 %942
          %v944 = vld [vmem:[#allocation4] sm:$0xff]
          %v945 = vld [vmem:[#allocation4 + $0x8] sm:$0xff]
          %v946 = vld [vmem:[#allocation4 + $0x10] sm:$0xff]
          %v947 = vld [vmem:[#allocation4 + $0x18] sm:$0xff]
          %v948 = vld [vmem:[#allocation4 + $0x20] sm:$0xff]
          %v949 = vld [vmem:[#allocation4 + $0x28] sm:$0xff]
          %v950 = vld [vmem:[#allocation4 + $0x30] sm:$0xff]
          %v951 = vld [vmem:[#allocation4 + $0x38] sm:$0xff]
          %v952 = vld [vmem:[#allocation4 + $0x40] sm:$0xff]
          %v953 = vld [vmem:[#allocation4 + $0x48] sm:$0xff]
          %v954 = vld [vmem:[#allocation4 + $0x50] sm:$0xff]
          %v955 = vld [vmem:[#allocation4 + $0x58] sm:$0xff]
          %v956 = vld [vmem:[#allocation4 + $0x60] sm:$0xff]
          %v957 = vld [vmem:[#allocation4 + $0x68] sm:$0xff]
          %v958 = vld [vmem:[#allocation4 + $0x70] sm:$0xff]
          %v959 = vld [vmem:[#allocation4 + $0x78] sm:$0xff]
          %v960 = vmul.f32 %v944, %v913
          %v961 = vmul.f32 %v945, %v915
          %v962 = vmul.f32 %v946, %v917
          %v963 = vmul.f32 %v947, %v919
          %v964 = vmul.f32 %v948, %v921
          %v965 = vmul.f32 %v949, %v923
          %v966 = vmul.f32 %v950, %v925
          %v967 = vmul.f32 %v951, %v927
          %v968 = vmul.f32 %v952, %v929
          %v969 = vmul.f32 %v953, %v931
          %v970 = vmul.f32 %v954, %v933
          %v971 = vmul.f32 %v955, %v935
          %v972 = vmul.f32 %v956, %v937
          %v973 = vmul.f32 %v957, %v939
          %v974 = vmul.f32 %v958, %v941
          %v975 = vmul.f32 %v959, %v943
          %v977 = vlaneseq
          %v978 = vshrl.u32 %v977, 7
          %v979 = vsub.s32 0, %v978
          %v980 = vrot.slane %v889, %v979
          %v982 = vmul.f32 %v960, %v980
          %v983 = vmul.f32 %v961, %v980
          %v984 = vmul.f32 %v962, %v980
          %v985 = vmul.f32 %v963, %v980
          %v986 = vmul.f32 %v964, %v980
          %v987 = vmul.f32 %v965, %v980
          %v988 = vmul.f32 %v966, %v980
          %v989 = vmul.f32 %v967, %v980
          %v990 = vmul.f32 %v968, %v980
          %v991 = vmul.f32 %v969, %v980
          %v992 = vmul.f32 %v970, %v980
          %v993 = vmul.f32 %v971, %v980
          %v994 = vmul.f32 %v972, %v980
          %v995 = vmul.f32 %v973, %v980
          %v996 = vmul.f32 %v974, %v980
          %v997 = vmul.f32 %v975, %v980
          %vm998 = vcmp.lt.s32.totalorder %v399, 8
          %v999 = vsel %vm998, 1, 0
          %vm1000 = vcmp.eq.s32.totalorder %v999, 1
          %v1001 = vsel %vm1000, %v982, -1e+30
          %v1002 = vsel %vm1000, %v983, -1e+30
          %v1003 = vsel %vm1000, %v984, -1e+30
          %v1004 = vsel %vm1000, %v985, -1e+30
          %v1005 = vsel %vm1000, %v986, -1e+30
          %v1006 = vsel %vm1000, %v987, -1e+30
          %v1007 = vsel %vm1000, %v988, -1e+30
          %v1008 = vsel %vm1000, %v989, -1e+30
          %v1009 = vsel %vm1000, %v990, -1e+30
          %v1010 = vsel %vm1000, %v991, -1e+30
          %v1011 = vsel %vm1000, %v992, -1e+30
          %v1012 = vsel %vm1000, %v993, -1e+30
          %v1013 = vsel %vm1000, %v994, -1e+30
          %v1014 = vsel %vm1000, %v995, -1e+30
          %v1015 = vsel %vm1000, %v996, -1e+30
          %v1016 = vsel %vm1000, %v997, -1e+30
          %1017 = vmax.xlane.f32.xlu0 %v1001
          %v1018 = vpop.xlane.xlu0 %1017
          %1019 = vmax.xlane.f32.xlu0 %v1002
          %v1020 = vpop.xlane.xlu0 %1019
          %1021 = vmax.xlane.f32.xlu0 %v1003
          %v1022 = vpop.xlane.xlu0 %1021
          %1023 = vmax.xlane.f32.xlu0 %v1004
          %v1024 = vpop.xlane.xlu0 %1023
          %1025 = vmax.xlane.f32.xlu0 %v1005
          %v1026 = vpop.xlane.xlu0 %1025
          %1027 = vmax.xlane.f32.xlu0 %v1006
          %v1028 = vpop.xlane.xlu0 %1027
          %1029 = vmax.xlane.f32.xlu0 %v1007
          %v1030 = vpop.xlane.xlu0 %1029
          %1031 = vmax.xlane.f32.xlu0 %v1008
          %v1032 = vpop.xlane.xlu0 %1031
          %1033 = vmax.xlane.f32.xlu0 %v1009
          %v1034 = vpop.xlane.xlu0 %1033
          %1035 = vmax.xlane.f32.xlu0 %v1010
          %v1036 = vpop.xlane.xlu0 %1035
          %1037 = vmax.xlane.f32.xlu0 %v1011
          %v1038 = vpop.xlane.xlu0 %1037
          %1039 = vmax.xlane.f32.xlu0 %v1012
          %v1040 = vpop.xlane.xlu0 %1039
          %1041 = vmax.xlane.f32.xlu0 %v1013
          %v1042 = vpop.xlane.xlu0 %1041
          %1043 = vmax.xlane.f32.xlu0 %v1014
          %v1044 = vpop.xlane.xlu0 %1043
          %1045 = vmax.xlane.f32.xlu0 %v1015
          %v1046 = vpop.xlane.xlu0 %1045
          %1047 = vmax.xlane.f32.xlu0 %v1016
          %v1048 = vpop.xlane.xlu0 %1047
          %v1049 = vsub.f32 %v1001, %v1018
          %v1050 = vsub.f32 %v1002, %v1020
          %v1051 = vsub.f32 %v1003, %v1022
          %v1052 = vsub.f32 %v1004, %v1024
          %v1053 = vsub.f32 %v1005, %v1026
          %v1054 = vsub.f32 %v1006, %v1028
          %v1055 = vsub.f32 %v1007, %v1030
          %v1056 = vsub.f32 %v1008, %v1032
          %v1057 = vsub.f32 %v1009, %v1034
          %v1058 = vsub.f32 %v1010, %v1036
          %v1059 = vsub.f32 %v1011, %v1038
          %v1060 = vsub.f32 %v1012, %v1040
          %v1061 = vsub.f32 %v1013, %v1042
          %v1062 = vsub.f32 %v1014, %v1044
          %v1063 = vsub.f32 %v1015, %v1046
          %v1064 = vsub.f32 %v1016, %v1048
          %v1065 = vmul.f32 %v1049, 1.442695
          %v1066 = vpow.pop %v1065
          %v1067 = vmul.f32 %v1050, 1.442695
          %v1068 = vpow.pop %v1067
          %v1069 = vmul.f32 %v1051, 1.442695
          %v1070 = vpow.pop %v1069
          %v1071 = vmul.f32 %v1052, 1.442695
          %v1072 = vpow.pop %v1071
          %v1073 = vmul.f32 %v1053, 1.442695
          %v1074 = vpow.pop %v1073
          %v1075 = vmul.f32 %v1054, 1.442695
          %v1076 = vpow.pop %v1075
          %v1077 = vmul.f32 %v1055, 1.442695
          %v1078 = vpow.pop %v1077
          %v1079 = vmul.f32 %v1056, 1.442695
          %v1080 = vpow.pop %v1079
          %v1081 = vmul.f32 %v1057, 1.442695
          %v1082 = vpow.pop %v1081
          %v1083 = vmul.f32 %v1058, 1.442695
          %v1084 = vpow.pop %v1083
          %v1085 = vmul.f32 %v1059, 1.442695
          %v1086 = vpow.pop %v1085
          %v1087 = vmul.f32 %v1060, 1.442695
          %v1088 = vpow.pop %v1087
          %v1089 = vmul.f32 %v1061, 1.442695
          %v1090 = vpow.pop %v1089
          %v1091 = vmul.f32 %v1062, 1.442695
          %v1092 = vpow.pop %v1091
          %v1093 = vmul.f32 %v1063, 1.442695
          %v1094 = vpow.pop %v1093
          %v1095 = vmul.f32 %v1064, 1.442695
          %v1096 = vpow.pop %v1095
          %1097 = vadd.xlane.f32.xlu0 %v1066
          %v1098 = vpop.xlane.xlu0 %1097
          %1099 = vadd.xlane.f32.xlu0 %v1068
          %v1100 = vpop.xlane.xlu0 %1099
          %1101 = vadd.xlane.f32.xlu0 %v1070
          %v1102 = vpop.xlane.xlu0 %1101
          %1103 = vadd.xlane.f32.xlu0 %v1072
          %v1104 = vpop.xlane.xlu0 %1103
          %1105 = vadd.xlane.f32.xlu0 %v1074
          %v1106 = vpop.xlane.xlu0 %1105
          %1107 = vadd.xlane.f32.xlu0 %v1076
          %v1108 = vpop.xlane.xlu0 %1107
          %1109 = vadd.xlane.f32.xlu0 %v1078
          %v1110 = vpop.xlane.xlu0 %1109
          %1111 = vadd.xlane.f32.xlu0 %v1080
          %v1112 = vpop.xlane.xlu0 %1111
          %1113 = vadd.xlane.f32.xlu0 %v1082
          %v1114 = vpop.xlane.xlu0 %1113
          %1115 = vadd.xlane.f32.xlu0 %v1084
          %v1116 = vpop.xlane.xlu0 %1115
          %1117 = vadd.xlane.f32.xlu0 %v1086
          %v1118 = vpop.xlane.xlu0 %1117
          %1119 = vadd.xlane.f32.xlu0 %v1088
          %v1120 = vpop.xlane.xlu0 %1119
          %1121 = vadd.xlane.f32.xlu0 %v1090
          %v1122 = vpop.xlane.xlu0 %1121
          %1123 = vadd.xlane.f32.xlu0 %v1092
          %v1124 = vpop.xlane.xlu0 %1123
          %1125 = vadd.xlane.f32.xlu0 %v1094
          %v1126 = vpop.xlane.xlu0 %1125
          %1127 = vadd.xlane.f32.xlu0 %v1096
          %v1128 = vpop.xlane.xlu0 %1127
          %v1129 = vlog2.pop %v1098
          %v1130 = vmul.f32 %v1129, 0.6931472
          %v1131 = vlog2.pop %v1100
          %v1132 = vmul.f32 %v1131, 0.6931472
          %v1133 = vlog2.pop %v1102
          %v1134 = vmul.f32 %v1133, 0.6931472
          %v1135 = vlog2.pop %v1104
          %v1136 = vmul.f32 %v1135, 0.6931472
          %v1137 = vlog2.pop %v1106
          %v1138 = vmul.f32 %v1137, 0.6931472
          %v1139 = vlog2.pop %v1108
          %v1140 = vmul.f32 %v1139, 0.6931472
          %v1141 = vlog2.pop %v1110
          %v1142 = vmul.f32 %v1141, 0.6931472
          %v1143 = vlog2.pop %v1112
          %v1144 = vmul.f32 %v1143, 0.6931472
          %v1145 = vlog2.pop %v1114
          %v1146 = vmul.f32 %v1145, 0.6931472
          %v1147 = vlog2.pop %v1116
          %v1148 = vmul.f32 %v1147, 0.6931472
          %v1149 = vlog2.pop %v1118
          %v1150 = vmul.f32 %v1149, 0.6931472
          %v1151 = vlog2.pop %v1120
          %v1152 = vmul.f32 %v1151, 0.6931472
          %v1153 = vlog2.pop %v1122
          %v1154 = vmul.f32 %v1153, 0.6931472
          %v1155 = vlog2.pop %v1124
          %v1156 = vmul.f32 %v1155, 0.6931472
          %v1157 = vlog2.pop %v1126
          %v1158 = vmul.f32 %v1157, 0.6931472
          %v1159 = vlog2.pop %v1128
          %v1160 = vmul.f32 %v1159, 0.6931472
          %v1161 = vadd.f32 %v1130, %v1018
          %v1162 = vadd.f32 %v1132, %v1020
          %v1163 = vadd.f32 %v1134, %v1022
          %v1164 = vadd.f32 %v1136, %v1024
          %v1165 = vadd.f32 %v1138, %v1026
          %v1166 = vadd.f32 %v1140, %v1028
          %v1167 = vadd.f32 %v1142, %v1030
          %v1168 = vadd.f32 %v1144, %v1032
          %v1169 = vadd.f32 %v1146, %v1034
          %v1170 = vadd.f32 %v1148, %v1036
          %v1171 = vadd.f32 %v1150, %v1038
          %v1172 = vadd.f32 %v1152, %v1040
          %v1173 = vadd.f32 %v1154, %v1042
          %v1174 = vadd.f32 %v1156, %v1044
          %v1175 = vadd.f32 %v1158, %v1046
          %v1176 = vadd.f32 %v1160, %v1048
          %v1177 = vsel %vm868, %v1001, 0.0
          %v1178 = vsel %vm869, %v1002, 0.0
          %v1179 = vsel %vm870, %v1003, 0.0
          %v1180 = vsel %vm871, %v1004, 0.0
          %v1181 = vsel %vm872, %v1005, 0.0
          %v1182 = vsel %vm873, %v1006, 0.0
          %v1183 = vsel %vm874, %v1007, 0.0
          %v1184 = vsel %vm875, %v1008, 0.0
          %v1185 = vsel %vm876, %v1009, 0.0
          %v1186 = vsel %vm877, %v1010, 0.0
          %v1187 = vsel %vm878, %v1011, 0.0
          %v1188 = vsel %vm879, %v1012, 0.0
          %v1189 = vsel %vm880, %v1013, 0.0
          %v1190 = vsel %vm881, %v1014, 0.0
          %v1191 = vsel %vm882, %v1015, 0.0
          %v1192 = vsel %vm883, %v1016, 0.0
          %1193 = vadd.xlane.f32.xlu0 %v1177
          %v1194 = vpop.xlane.xlu0 %1193
          %1195 = vadd.xlane.f32.xlu0 %v1178
          %v1196 = vpop.xlane.xlu0 %1195
          %1197 = vadd.xlane.f32.xlu0 %v1179
          %v1198 = vpop.xlane.xlu0 %1197
          %1199 = vadd.xlane.f32.xlu0 %v1180
          %v1200 = vpop.xlane.xlu0 %1199
          %1201 = vadd.xlane.f32.xlu0 %v1181
          %v1202 = vpop.xlane.xlu0 %1201
          %1203 = vadd.xlane.f32.xlu0 %v1182
          %v1204 = vpop.xlane.xlu0 %1203
          %1205 = vadd.xlane.f32.xlu0 %v1183
          %v1206 = vpop.xlane.xlu0 %1205
          %1207 = vadd.xlane.f32.xlu0 %v1184
          %v1208 = vpop.xlane.xlu0 %1207
          %1209 = vadd.xlane.f32.xlu0 %v1185
          %v1210 = vpop.xlane.xlu0 %1209
          %1211 = vadd.xlane.f32.xlu0 %v1186
          %v1212 = vpop.xlane.xlu0 %1211
          %1213 = vadd.xlane.f32.xlu0 %v1187
          %v1214 = vpop.xlane.xlu0 %1213
          %1215 = vadd.xlane.f32.xlu0 %v1188
          %v1216 = vpop.xlane.xlu0 %1215
          %1217 = vadd.xlane.f32.xlu0 %v1189
          %v1218 = vpop.xlane.xlu0 %1217
          %1219 = vadd.xlane.f32.xlu0 %v1190
          %v1220 = vpop.xlane.xlu0 %1219
          %1221 = vadd.xlane.f32.xlu0 %v1191
          %v1222 = vpop.xlane.xlu0 %1221
          %1223 = vadd.xlane.f32.xlu0 %v1192
          %v1224 = vpop.xlane.xlu0 %1223
          %v1225 = vsub.f32 %v1161, %v1194
          %v1226 = vsub.f32 %v1162, %v1196
          %v1227 = vsub.f32 %v1163, %v1198
          %v1228 = vsub.f32 %v1164, %v1200
          %v1229 = vsub.f32 %v1165, %v1202
          %v1230 = vsub.f32 %v1166, %v1204
          %v1231 = vsub.f32 %v1167, %v1206
          %v1232 = vsub.f32 %v1168, %v1208
          %v1233 = vsub.f32 %v1169, %v1210
          %v1234 = vsub.f32 %v1170, %v1212
          %v1235 = vsub.f32 %v1171, %v1214
          %v1236 = vsub.f32 %v1172, %v1216
          %v1237 = vsub.f32 %v1173, %v1218
          %v1238 = vsub.f32 %v1174, %v1220
          %v1239 = vsub.f32 %v1175, %v1222
          %v1240 = vsub.f32 %v1176, %v1224
          %vm1241 = vcmp.lt.s32.totalorder %v401, 8
          %vm1242 = vcmp.lt.s32.totalorder %v853, 8
          %vm1243 = vcmp.lt.s32.totalorder %v854, 8
          %vm1244 = vcmp.lt.s32.totalorder %v855, 8
          %vm1245 = vcmp.lt.s32.totalorder %v856, 8
          %vm1246 = vcmp.lt.s32.totalorder %v857, 8
          %vm1247 = vcmp.lt.s32.totalorder %v858, 8
          %vm1248 = vcmp.lt.s32.totalorder %v859, 8
          %vm1249 = vcmp.lt.s32.totalorder %v860, 8
          %vm1250 = vcmp.lt.s32.totalorder %v861, 8
          %vm1251 = vcmp.lt.s32.totalorder %v862, 8
          %vm1252 = vcmp.lt.s32.totalorder %v863, 8
          %vm1253 = vcmp.lt.s32.totalorder %v864, 8
          %vm1254 = vcmp.lt.s32.totalorder %v865, 8
          %vm1255 = vcmp.lt.s32.totalorder %v866, 8
          %vm1256 = vcmp.lt.s32.totalorder %v867, 8
          %v1257 = vsel %vm1241, %v1225, 0.0
          %v1258 = vsel %vm1242, %v1226, 0.0
          %v1259 = vsel %vm1243, %v1227, 0.0
          %v1260 = vsel %vm1244, %v1228, 0.0
          %v1261 = vsel %vm1245, %v1229, 0.0
          %v1262 = vsel %vm1246, %v1230, 0.0
          %v1263 = vsel %vm1247, %v1231, 0.0
          %v1264 = vsel %vm1248, %v1232, 0.0
          %v1265 = vsel %vm1249, %v1233, 0.0
          %v1266 = vsel %vm1250, %v1234, 0.0
          %v1267 = vsel %vm1251, %v1235, 0.0
          %v1268 = vsel %vm1252, %v1236, 0.0
          %v1269 = vsel %vm1253, %v1237, 0.0
          %v1270 = vsel %vm1254, %v1238, 0.0
          %v1271 = vsel %vm1255, %v1239, 0.0
          %v1272 = vsel %vm1256, %v1240, 0.0
          %v1273 = vsel %vm432, %v1257, 0.0
          %v1274 = vsel %vm432, %v1258, 0.0
          %v1275 = vadd.f32 %v1273, %v1274
          %v1276 = vsel %vm432, %v1259, 0.0
          %v1277 = vadd.f32 %v1275, %v1276
          %v1278 = vsel %vm432, %v1260, 0.0
          %v1279 = vadd.f32 %v1277, %v1278
          %v1280 = vsel %vm432, %v1261, 0.0
          %v1281 = vadd.f32 %v1279, %v1280
          %v1282 = vsel %vm432, %v1262, 0.0
          %v1283 = vadd.f32 %v1281, %v1282
          %v1284 = vsel %vm432, %v1263, 0.0
          %v1285 = vadd.f32 %v1283, %v1284
          %v1286 = vsel %vm432, %v1264, 0.0
          %v1287 = vadd.f32 %v1285, %v1286
          %v1288 = vsel %vm432, %v1265, 0.0
          %v1289 = vadd.f32 %v1287, %v1288
          %v1290 = vsel %vm432, %v1266, 0.0
          %v1291 = vadd.f32 %v1289, %v1290
          %v1292 = vsel %vm432, %v1267, 0.0
          %v1293 = vadd.f32 %v1291, %v1292
          %v1294 = vsel %vm432, %v1268, 0.0
          %v1295 = vadd.f32 %v1293, %v1294
          %v1296 = vsel %vm432, %v1269, 0.0
          %v1297 = vadd.f32 %v1295, %v1296
          %v1298 = vsel %vm432, %v1270, 0.0
          %v1299 = vadd.f32 %v1297, %v1298
          %v1300 = vsel %vm432, %v1271, 0.0
          %v1301 = vadd.f32 %v1299, %v1300
          %v1302 = vsel %vm432, %v1272, 0.0
          %v1303 = vadd.f32 %v1301, %v1302
          %1304 = vadd.xlane.f32.xlu0 %v1303
          %v1305 = vpop.xlane.xlu0 %1304
          %v1306 = vrot.slane %v1305, 4
          %v1307 = vadd.f32 %v1305, %v1306
          %v1308 = vrot.slane %v1307, 2
          %v1309 = vadd.f32 %v1307, %v1308
          %v1310 = vrot.slane %v1309, 1
          %v1311 = vadd.f32 %v1309, %v1310
          %s1312 = vtos %v1311
          %v1313 = vrcp.pop 8.0
          %s1314 = vtos %v1313
          %s1315 = smul.f32 %s1312, %s1314
          %v1316 = vld [vmem:[#allocation7] sm:$0x1]
          %vm1317 = vcmask 1040384
          %v1318 = vsel %vm1317, %v1316, 0.0
          %1319 = vadd.xlane.f32.xlu0 %v1318
          %v1320 = vpop.xlane.xlu0 %1319
          %v1321 = vrot.slane %v1320, 4
          %v1322 = vadd.f32 %v1320, %v1321
          %v1323 = vrot.slane %v1322, 2
          %v1324 = vadd.f32 %v1322, %v1323
          %v1325 = vrot.slane %v1324, 1
          %v1326 = vadd.f32 %v1324, %v1325
          %s1327 = vtos %v1326
          %v1328 = vstv %s1327
          %v1329 = vrcp.pop %v1328
          %v1330 = vmul.f32 %v1316, %v1329
          %vm1331 = vcmp.gt.f32.partialorder %v1330, 0.0
          %v1332 = vmax.f32 %v1330, 1e-38
          %v1333 = vlog2.pop %v1332
          %v1334 = vmul.f32 %v1333, 0.6931472
          %v1335 = vmul.f32 %v1330, %v1334
          %v1336 = vsel %vm1331, %v1335, 0.0
          %v1337 = vsel %vm1317, %v1336, 0.0
          %1338 = vadd.xlane.f32.xlu0 %v1337
          %v1339 = vpop.xlane.xlu0 %1338
          %v1340 = vrot.slane %v1339, 4
          %v1341 = vadd.f32 %v1339, %v1340
          %v1342 = vrot.slane %v1341, 2
          %v1343 = vadd.f32 %v1341, %v1342
          %v1344 = vrot.slane %v1343, 1
          %v1345 = vadd.f32 %v1343, %v1344
          %s1346 = vtos %v1345
          %s1347 = sadd.f32 %s1346, 2.0794415
          %s1348 = smul.f32 %s1347, 2.0
          %s1349 = sadd.f32 %s1315, %s1348
          %s1350 = scalar_lea.smem [#allocation16], 0
          %1351 = sst [smem:[%s1350]] %s1349
        $region68: #{tpu_custom_call.1} parent=35 // pred_fallthru
          _
        // Predicated region
        $region69: #{tpu_custom_call.1} parent=35 // pred_check
          %p1352 = pneg %p149
        $region70: #{tpu_custom_call.1} parent=35 // pred_check_branch
          %1354 = sbr.rel (%p1352) target = $region72
        $region71: #{tpu_custom_call.1} parent=35 // pred_region
          %s1356 = ssub.s32 16, 16
          %1357 = vsyncadd [#allocation10], %s1356
          %1360 = dma.smem_to_hbm [#allocation16], 16, %s4, [#allocation10]
        $region72: #{tpu_custom_call.1} parent=35 // pred_fallthru
          _
        // Predicated region
        $region73: #{tpu_custom_call.1} parent=35 // pred_check
          %p1361 = pneg %p149
        $region74: #{tpu_custom_call.1} parent=35 // pred_check_branch
          %1363 = sbr.rel (%p1361) target = $region76
        $region75: #{tpu_custom_call.1} parent=35 // pred_region
          %1364 = dma.done [#allocation10], 16
        $region76: #{tpu_custom_call.1} parent=35 // pred_fallthru
          _
        %1365 = sfence
      $region36: #{tpu_custom_call.1} parent=5 // pred_fallthru
        _
      %p1366 = scmp.le.s32.totalorder 2, %s20
      // Predicated region
      $region77: #{tpu_custom_call.1} parent=5 // pred_check
        %p1367 = pneg %p1366
      $region78: #{tpu_custom_call.1} parent=5 // pred_check_branch
        %1369 = sbr.rel (%p1367) target = $region80
      $region79: #{tpu_custom_call.1} parent=5 // pred_region
        %s1370 = ssub.s32 %s20, 2
      $region80: #{tpu_custom_call.1} parent=5 // pred_fallthru
        _
    $region6: #{tpu_custom_call.1} parent=1 // loop_footer
      %s24 = sadd.s32 1, %s20
    $region7: #{tpu_custom_call.1} parent=1 // loop_footer_branch
      %19 = sbr.rel target = $region3
    $region8: #{tpu_custom_call.1} parent=1 // loop_exit
      _
    %1371 = vsyncpa [#allocation9], 1
    %s1372 = scalar_lea.sflag [#allocation9], 1
    %1373 = vsyncpa %s1372, 1
    %1374 = vsyncpa [#allocation12], 1
    %s1375 = scalar_lea.sflag [#allocation12], 1
    %1376 = vsyncpa %s1375, 1
    %1377 = vsyncpa [#allocation15], 1
    %s1378 = scalar_lea.sflag [#allocation15], 1
    %1379 = vsyncpa %s1378, 1
    %1380 = vsyncpa [#allocation10], 1
    %s1381 = scalar_lea.sflag [#allocation10], 1
    %1382 = vsyncpa %s1381, 1

</llo_original>
